<compile_context>
chip_gen: v5e
topology: v5e:2x2
jax: 0.10.0
libtpu: 0.0.40
codegen_flags: <defaults>
</compile_context>

<pallas_src>
import functools

import jax
import jax.numpy as jnp
from jax import lax
from jax.experimental import pallas as pl
from jax.experimental.pallas import tpu as pltpu

EPS = 1e-5


# --------------------------------------------------------------------------- #
# Kernel 1: BN1 batch statistics (per-channel sum / sum-of-squares), one image
#           per grid step, accumulated along the "arbitrary" axis into a
#           per-shard (C, 1) resident accumulator.
# --------------------------------------------------------------------------- #
def _bn1_stats_kernel(x_ref, sum_ref, sq_ref):
    @pl.when(pl.program_id(1) == 0)
    def _():
        sum_ref[...] = jnp.zeros_like(sum_ref)
        sq_ref[...] = jnp.zeros_like(sq_ref)

    x = x_ref[...].astype(jnp.float32)                      # (C, HW)
    sum_ref[...] += jnp.sum(x, axis=1, keepdims=True)       # (C, 1)
    sq_ref[...] += jnp.sum(x * x, axis=1, keepdims=True)


# --------------------------------------------------------------------------- #
# Kernel 2: BN1-normalize + ReLU + 1x1 conv (one MXU matmul per image), h is
#           stored in compute_dtype (bf16 default) while BN2 stats accumulate
#           from the f32 matmul result.
# --------------------------------------------------------------------------- #
def _bn1_relu_conv1_stats2_kernel(x_ref, scale1_ref, shift1_ref, w1_ref,
                                  h_ref, sum_ref, sq_ref):
    @pl.when(pl.program_id(1) == 0)
    def _():
        sum_ref[...] = jnp.zeros_like(sum_ref)
        sq_ref[...] = jnp.zeros_like(sq_ref)

    # (C, HW) * (C, 1) broadcast over lanes; all f32.
    a1 = jnp.maximum(x_ref[...] * scale1_ref[...] + shift1_ref[...], 0.0)
    h = jnp.dot(w1_ref[...], a1.astype(w1_ref.dtype),
                preferred_element_type=jnp.float32)         # (IC, HW) f32
    h_ref[...] = h.astype(h_ref.dtype)
    sum_ref[...] += jnp.sum(h, axis=1, keepdims=True)
    sq_ref[...] += jnp.sum(h * h, axis=1, keepdims=True)


# --------------------------------------------------------------------------- #
# Kernel 3: per image: BN2-normalize + ReLU, 3x3/pad=1 conv as ONE stacked MXU
#           matmul followed by 9 static lane rolls + boundary masks accumulated
#           in registers; channel concat with x fused into the output tile.
# --------------------------------------------------------------------------- #
def _bn2_relu_conv2_concat_kernel(img_w, x_ref, h_ref, scale2_ref, shift2_ref,
                                  w2_ref, masks_ref, out_ref):
    c_in = x_ref.shape[0]
    growth = out_ref.shape[0] - c_in
    hw = h_ref.shape[1]

    a2 = jnp.maximum(h_ref[...].astype(jnp.float32) * scale2_ref[...]
                     + shift2_ref[...], 0.0)
    a2 = a2.astype(w2_ref.dtype)                            # (IC, HW)

    # Single stacked matmul for all 9 taps: (9G, IC) @ (IC, HW) -> (9G, HW).
    big = jnp.dot(w2_ref[...], a2, preferred_element_type=jnp.float32)
    masks = masks_ref[...]                                  # (9, HW) f32

    acc = jnp.zeros((growth, hw), jnp.float32)              # register accumulator
    for k in range(9):                                      # statically unrolled
        ky, kx = k // 3 - 1, k % 3 - 1                      # spatial offsets
        off = ky * img_w + kx                               # flat lane offset
        bk = big[k * growth:(k + 1) * growth, :]            # (G, HW)
        if off != 0:
            # static cyclic lane shift; wrapped/out-of-range lanes are masked
            bk = jnp.roll(bk, -off, axis=1)
        acc = acc + bk * masks[k:k + 1, :]

    out_ref[:c_in, :] = x_ref[...].astype(out_ref.dtype)    # fused concat
    out_ref[c_in:, :] = acc.astype(out_ref.dtype)


def bottleneck_forward(x_nchw, g1, b1, w1, g2, b2, w2, *,
                       compute_dtype=jnp.bfloat16):
    """DenseNet Bottleneck forward (training-mode BN).  NCHW in / NCHW out.

    compute_dtype controls the MXU operand dtype and the storage dtype of the
    h intermediate (BN / stats / accumulation always in f32).
    """
    N, C, H, W = x_nchw.shape
    interC = w1.shape[0]
    growth = w2.shape[0]
    HW = H * W
    M = N * HW

    # Two partial-stat shards so the accumulating passes can split across the
    # two TensorCores of a v7x chip (no-op cost on 1-TC v5e/v6e).
    P = 2 if (N >= 2 and N % 2 == 0) else 1
    Npc = N // P

    x3d = x_nchw.reshape(N, C, HW)                      # free reshape, no transpose
    w1mat = w1[:, :, 0, 0].astype(compute_dtype)        # (IC, C)
    # (G, IC, 3, 3) -> (3, 3, G, IC) -> (9*G, IC); tap k = ky*3 + kx.
    w2stack = jnp.transpose(w2, (2, 3, 0, 1)).reshape(9 * growth, interC)
    w2stack = w2stack.astype(compute_dtype)

    # Per-tap validity masks for the zero padding of the 3x3 conv (built once,
    # tiny; kills both the row-wrap and the out-of-image lanes after the roll).
    yy = jnp.arange(HW, dtype=jnp.int32) // W
    xx = jnp.arange(HW, dtype=jnp.int32) % W
    mask_rows = []
    for k in range(9):
        ky, kx = k // 3 - 1, k % 3 - 1
        valid = ((yy + ky >= 0) & (yy + ky < H) &
                 (xx + kx >= 0) & (xx + kx < W))
        mask_rows.append(valid.astype(jnp.float32))
    masks = jnp.stack(mask_rows, axis=0)                # (9, HW)

    # ---- Kernel 1: BN1 batch statistics -------------------------------------
    s1p, q1p = pl.pallas_call(
        _bn1_stats_kernel,
        out_shape=(jax.ShapeDtypeStruct((P, C, 1), jnp.float32),
                   jax.ShapeDtypeStruct((P, C, 1), jnp.float32)),
        grid=(P, Npc),
        in_specs=[pl.BlockSpec((None, C, HW), lambda p, j: (p * Npc + j, 0, 0))],
        out_specs=(pl.BlockSpec((None, C, 1), lambda p, j: (p, 0, 0)),
                   pl.BlockSpec((None, C, 1), lambda p, j: (p, 0, 0))),
        compiler_params=pltpu.CompilerParams(
            dimension_semantics=("parallel", "arbitrary")),
    )(x3d)

    s1 = jnp.sum(s1p, axis=0)                           # (C, 1)
    q1 = jnp.sum(q1p, axis=0)
    mean1 = s1 / M
    # Biased variance (training BN). E[x^2]-E[x]^2 in f32 with a >=0 clamp;
    # fine at these scales (Welford only needed if inputs move to bf16).
    var1 = jnp.maximum(q1 / M - mean1 * mean1, 0.0)
    scale1 = g1.reshape(C, 1) * lax.rsqrt(var1 + EPS)
    shift1 = b1.reshape(C, 1) - mean1 * scale1

    # ---- Kernel 2: BN1 + ReLU + 1x1 conv + BN2 stats ------------------------
    h3d, s2p, q2p = pl.pallas_call(
        _bn1_relu_conv1_stats2_kernel,
        out_shape=(jax.ShapeDtypeStruct((N, interC, HW), compute_dtype),
                   jax.ShapeDtypeStruct((P, interC, 1), jnp.float32),
                   jax.ShapeDtypeStruct((P, interC, 1), jnp.float32)),
        grid=(P, Npc),
        in_specs=[
            pl.BlockSpec((None, C, HW), lambda p, j: (p * Npc + j, 0, 0)),
            pl.BlockSpec((C, 1), lambda p, j: (0, 0)),
            pl.BlockSpec((C, 1), lambda p, j: (0, 0)),
            pl.BlockSpec((interC, C), lambda p, j: (0, 0)),
        ],
        out_specs=(
            pl.BlockSpec((None, interC, HW), lambda p, j: (p * Npc + j, 0, 0)),
            pl.BlockSpec((None, interC, 1), lambda p, j: (p, 0, 0)),
            pl.BlockSpec((None, interC, 1), lambda p, j: (p, 0, 0)),
        ),
        compiler_params=pltpu.CompilerParams(
            dimension_semantics=("parallel", "arbitrary")),
    )(x3d, scale1, shift1, w1mat)

    s2 = jnp.sum(s2p, axis=0)
    q2 = jnp.sum(q2p, axis=0)
    mean2 = s2 / M
    var2 = jnp.maximum(q2 / M - mean2 * mean2, 0.0)
    scale2 = g2.reshape(interC, 1) * lax.rsqrt(var2 + EPS)
    shift2 = b2.reshape(interC, 1) - mean2 * scale2

    # ---- Kernel 3: BN2 + ReLU + 3x3 conv + concat(x, y) ---------------------
    # TODO(synk): for very large C / H*W (v7x's 64 MiB VMEM) additionally tile
    # this over image-row stripes with a +-1 row halo instead of one full image
    # per grid step.
    out3d = pl.pallas_call(
        functools.partial(_bn2_relu_conv2_concat_kernel, W),
        out_shape=jax.ShapeDtypeStruct((N, C + growth, HW), x_nchw.dtype),
        grid=(N,),
        in_specs=[
            pl.BlockSpec((None, C, HW), lambda n: (n, 0, 0)),
            pl.BlockSpec((None, interC, HW), lambda n: (n, 0, 0)),
            pl.BlockSpec((interC, 1), lambda n: (0, 0)),
            pl.BlockSpec((interC, 1), lambda n: (0, 0)),
            pl.BlockSpec((9 * growth, interC), lambda n: (0, 0)),
            pl.BlockSpec((9, HW), lambda n: (0, 0)),
        ],
        out_specs=pl.BlockSpec((None, C + growth, HW), lambda n: (n, 0, 0)),
        compiler_params=pltpu.CompilerParams(dimension_semantics=("parallel",)),
    )(x3d, h3d, scale2, shift2, w2stack, masks)

    return out3d.reshape(N, C + growth, H, W)           # free reshape (NCHW out)


# ---- pure-JAX reference (NCHW, same semantics as the PyTorch module) --------
def ref_forward(x, g1, b1, w1, g2, b2, w2):
    def bn(t, g, b):
        mean = jnp.mean(t, axis=(0, 2, 3), keepdims=True)
        var = jnp.mean((t - mean) ** 2, axis=(0, 2, 3), keepdims=True)
        return ((t - mean) / jnp.sqrt(var + EPS)) * g.reshape(1, -1, 1, 1) \
            + b.reshape(1, -1, 1, 1)

    dn = ('NCHW', 'OIHW', 'NCHW')
    h = lax.conv_general_dilated(jnp.maximum(bn(x, g1, b1), 0.0), w1,
                                 (1, 1), 'VALID', dimension_numbers=dn)
    o = lax.conv_general_dilated(jnp.maximum(bn(h, g2, b2), 0.0), w2,
                                 (1, 1), ((1, 1), (1, 1)), dimension_numbers=dn)
    return jnp.concatenate([x, o], axis=1)


if __name__ == "__main__":
    # Small shapes: batch=2, nChannels=4, growthRate=4 -> interChannels=16, 16x16
    N, C, H, W = 2, 4, 16, 16
    growth = 4
    interC = 4 * growth

    key = jax.random.PRNGKey(0)
    k1, k2, k3, k4, k5, k6, k7 = jax.random.split(key, 7)

    x = jax.random.normal(k1, (N, C, H, W), jnp.float32)
    # conv weights (no bias, like the PyTorch module), deterministic init
    w1 = jax.random.normal(k2, (interC, C, 1, 1), jnp.float32) * (2.0 / C) ** 0.5
    w2 = jax.random.normal(k3, (growth, interC, 3, 3), jnp.float32) * (2.0 / (9 * interC)) ** 0.5
    # BN affine params (perturbed around PyTorch defaults gamma=1, beta=0)
    g1 = 1.0 + 0.1 * jax.random.normal(k4, (C,), jnp.float32)
    b1 = 0.1 * jax.random.normal(k5, (C,), jnp.float32)
    g2 = 1.0 + 0.1 * jax.random.normal(k6, (interC,), jnp.float32)
    b2 = 0.1 * jax.random.normal(k7, (interC,), jnp.float32)

    ref = ref_forward(x, g1, b1, w1, g2, b2, w2)

    # 1) All-f32 path: tight numerical check of the kernel math.
    fwd32 = jax.jit(functools.partial(bottleneck_forward,
                                      compute_dtype=jnp.float32))
    out32 = jax.block_until_ready(fwd32(x, g1, b1, w1, g2, b2, w2))
    assert out32.shape == (N, C + growth, H, W), out32.shape
    err32 = float(jnp.max(jnp.abs(out32 - ref)))
    assert jnp.allclose(out32, ref, atol=2e-4, rtol=2e-4), f"f32 max_err={err32}"

    # 2) Default fast path: bf16 MXU operands + bf16 h intermediate.
    fwd = jax.jit(bottleneck_forward)
    out = jax.block_until_ready(fwd(x, g1, b1, w1, g2, b2, w2))
    assert out.shape == (N, C + growth, H, W), out.shape
    errbf = float(jnp.max(jnp.abs(out - ref)))
    assert errbf < 0.15, f"bf16 max_err={errbf}"

    print("KERNEL_OK")
</pallas_src>

<mosaic_0001>
module attributes {stable_mosaic.version = 11 : i64} {
  func.func @_bn1_stats_kernel(%arg0: i32, %arg1: i32, %arg2: memref<1x4x256xf32, #tpu.memory_space<vmem>>, %arg3: memref<1x4x1xf32, #tpu.memory_space<vmem>>, %arg4: memref<1x4x1xf32, #tpu.memory_space<vmem>>) attributes {dimension_semantics = [#tpu.dimension_semantics<parallel>, #tpu.dimension_semantics<arbitrary>], iteration_bounds = array<i64: 2, 1>, scalar_prefetch = 0 : i64, scratch_operands = 0 : i64, tpu.core_type = #tpu.core_type<tc>, window_params = [{transform_indices = @transform_0, window_bounds = array<i64: 1, 4, 256>}, {transform_indices = @transform_1, window_bounds = array<i64: 1, 4, 1>}, {transform_indices = @transform_2, window_bounds = array<i64: 1, 4, 1>}]} {
    %c0_i32 = arith.constant 0 : i32
    %0 = arith.cmpi eq, %arg1, %c0_i32 : i32
    %1 = arith.extui %0 : i1 to i32
    %c0_i32_0 = arith.constant 0 : i32
    %2 = arith.cmpi ne, %1, %c0_i32_0 : i32
    scf.if %2 {
      %cst_16 = arith.constant 0.000000e+00 : f32
      %22 = vector.broadcast %cst_16 : f32 to vector<4x1xf32>
      %c0_17 = arith.constant 0 : index
      %c0_18 = arith.constant 0 : index
      %c0_19 = arith.constant 0 : index
      %23 = vector.load %arg3[%c0_17, %c0_18, %c0_19] : memref<1x4x1xf32, #tpu.memory_space<vmem>>, vector<1x4x1xf32>
      %24 = vector.shape_cast %23 : vector<1x4x1xf32> to vector<4x1xf32>
      %25 = vector.shape_cast %22 : vector<4x1xf32> to vector<1x4x1xf32>
      tpu.vector_store %arg3[%c0_17, %c0_18, %c0_19], %25 {strides = array<i32>} : memref<1x4x1xf32, #tpu.memory_space<vmem>>, vector<1x4x1xf32>,
      %cst_20 = arith.constant 0.000000e+00 : f32
      %26 = vector.broadcast %cst_20 : f32 to vector<4x1xf32>
      %c0_21 = arith.constant 0 : index
      %c0_22 = arith.constant 0 : index
      %c0_23 = arith.constant 0 : index
      %27 = vector.load %arg4[%c0_21, %c0_22, %c0_23] : memref<1x4x1xf32, #tpu.memory_space<vmem>>, vector<1x4x1xf32>
      %28 = vector.shape_cast %27 : vector<1x4x1xf32> to vector<4x1xf32>
      %29 = vector.shape_cast %26 : vector<4x1xf32> to vector<1x4x1xf32>
      tpu.vector_store %arg4[%c0_21, %c0_22, %c0_23], %29 {strides = array<i32>} : memref<1x4x1xf32, #tpu.memory_space<vmem>>, vector<1x4x1xf32>,
    } else {
    }
    %c0 = arith.constant 0 : index
    %c0_1 = arith.constant 0 : index
    %c0_2 = arith.constant 0 : index
    %3 = vector.load %arg2[%c0, %c0_1, %c0_2] : memref<1x4x256xf32, #tpu.memory_space<vmem>>, vector<1x4x256xf32>
    %4 = vector.shape_cast %3 : vector<1x4x256xf32> to vector<4x256xf32>
    %c0_3 = arith.constant 0 : index
    %c0_4 = arith.constant 0 : index
    %c0_5 = arith.constant 0 : index
    %5 = vector.load %arg3[%c0_3, %c0_4, %c0_5] : memref<1x4x1xf32, #tpu.memory_space<vmem>>, vector<1x4x1xf32>
    %6 = vector.shape_cast %5 : vector<1x4x1xf32> to vector<4x1xf32>
    %cst = arith.constant dense<0.000000e+00> : vector<4xf32>
    %7 = vector.multi_reduction <add>, %4, %cst [1] : vector<4x256xf32> to vector<4xf32>
    %8 = vector.shape_cast %7 : vector<4xf32> to vector<4x1xf32>
    %9 = arith.addf %6, %8 : vector<4x1xf32>
    %c0_6 = arith.constant 0 : index
    %c0_7 = arith.constant 0 : index
    %c0_8 = arith.constant 0 : index
    %10 = vector.load %arg3[%c0_6, %c0_7, %c0_8] : memref<1x4x1xf32, #tpu.memory_space<vmem>>, vector<1x4x1xf32>
    %11 = vector.shape_cast %10 : vector<1x4x1xf32> to vector<4x1xf32>
    %12 = vector.shape_cast %9 : vector<4x1xf32> to vector<1x4x1xf32>
    tpu.vector_store %arg3[%c0_6, %c0_7, %c0_8], %12 {strides = array<i32>} : memref<1x4x1xf32, #tpu.memory_space<vmem>>, vector<1x4x1xf32>,
    %c0_9 = arith.constant 0 : index
    %c0_10 = arith.constant 0 : index
    %c0_11 = arith.constant 0 : index
    %13 = vector.load %arg4[%c0_9, %c0_10, %c0_11] : memref<1x4x1xf32, #tpu.memory_space<vmem>>, vector<1x4x1xf32>
    %14 = vector.shape_cast %13 : vector<1x4x1xf32> to vector<4x1xf32>
    %15 = arith.mulf %4, %4 : vector<4x256xf32>
    %cst_12 = arith.constant dense<0.000000e+00> : vector<4xf32>
    %16 = vector.multi_reduction <add>, %15, %cst_12 [1] : vector<4x256xf32> to vector<4xf32>
    %17 = vector.shape_cast %16 : vector<4xf32> to vector<4x1xf32>
    %18 = arith.addf %14, %17 : vector<4x1xf32>
    %c0_13 = arith.constant 0 : index
    %c0_14 = arith.constant 0 : index
    %c0_15 = arith.constant 0 : index
    %19 = vector.load %arg4[%c0_13, %c0_14, %c0_15] : memref<1x4x1xf32, #tpu.memory_space<vmem>>, vector<1x4x1xf32>
    %20 = vector.shape_cast %19 : vector<1x4x1xf32> to vector<4x1xf32>
    %21 = vector.shape_cast %18 : vector<4x1xf32> to vector<1x4x1xf32>
    tpu.vector_store %arg4[%c0_13, %c0_14, %c0_15], %21 {strides = array<i32>} : memref<1x4x1xf32, #tpu.memory_space<vmem>>, vector<1x4x1xf32>,
    return
  }
  func.func @transform_0(%arg0: i32, %arg1: i32) -> (i32, i32, i32) {
    %c1_i32 = arith.constant 1 : i32
    %0 = arith.muli %arg0, %c1_i32 : i32
    %1 = arith.addi %0, %arg1 : i32
    %c0_i32 = arith.constant 0 : i32
    %c0_i32_0 = arith.constant 0 : i32
    %c0_i32_1 = arith.constant 0 : i32
    return %1, %c0_i32, %c0_i32_0 : i32, i32, i32
  }
  func.func @transform_1(%arg0: i32, %arg1: i32) -> (i32, i32, i32) {
    %c0_i32 = arith.constant 0 : i32
    %c0_i32_0 = arith.constant 0 : i32
    %c0_i32_1 = arith.constant 0 : i32
    return %arg0, %c0_i32, %c0_i32_0 : i32, i32, i32
  }
  func.func @transform_2(%arg0: i32, %arg1: i32) -> (i32, i32, i32) {
    %c0_i32 = arith.constant 0 : i32
    %c0_i32_0 = arith.constant 0 : i32
    %c0_i32_1 = arith.constant 0 : i32
    return %arg0, %c0_i32, %c0_i32_0 : i32, i32, i32
  }
}

module attributes {stable_mosaic.version = 11 : i64} {
  func.func @_bn1_relu_conv1_stats2_kernel(%arg0: i32, %arg1: i32, %arg2: memref<1x4x256xf32, #tpu.memory_space<vmem>>, %arg3: memref<4x1xf32, #tpu.memory_space<vmem>>, %arg4: memref<4x1xf32, #tpu.memory_space<vmem>>, %arg5: memref<16x4xf32, #tpu.memory_space<vmem>>, %arg6: memref<1x16x256xf32, #tpu.memory_space<vmem>>, %arg7: memref<1x16x1xf32, #tpu.memory_space<vmem>>, %arg8: memref<1x16x1xf32, #tpu.memory_space<vmem>>) attributes {dimension_semantics = [#tpu.dimension_semantics<parallel>, #tpu.dimension_semantics<arbitrary>], iteration_bounds = array<i64: 2, 1>, scalar_prefetch = 0 : i64, scratch_operands = 0 : i64, tpu.core_type = #tpu.core_type<tc>, window_params = [{transform_indices = @transform_0, window_bounds = array<i64: 1, 4, 256>}, {pipeline_mode = #tpu.pipeline_mode<synchronous>, transform_indices = @transform_1, window_bounds = array<i64: 4, 1>}, {pipeline_mode = #tpu.pipeline_mode<synchronous>, transform_indices = @transform_2, window_bounds = array<i64: 4, 1>}, {pipeline_mode = #tpu.pipeline_mode<synchronous>, transform_indices = @transform_3, window_bounds = array<i64: 16, 4>}, {transform_indices = @transform_4, window_bounds = array<i64: 1, 16, 256>}, {transform_indices = @transform_5, window_bounds = array<i64: 1, 16, 1>}, {transform_indices = @transform_6, window_bounds = array<i64: 1, 16, 1>}]} {
    %c0_i32 = arith.constant 0 : i32
    %0 = arith.cmpi eq, %arg1, %c0_i32 : i32
    %1 = arith.extui %0 : i1 to i32
    %c0_i32_0 = arith.constant 0 : i32
    %2 = arith.cmpi ne, %1, %c0_i32_0 : i32
    scf.if %2 {
      %cst_27 = arith.constant 0.000000e+00 : f32
      %35 = vector.broadcast %cst_27 : f32 to vector<16x1xf32>
      %c0_28 = arith.constant 0 : index
      %c0_29 = arith.constant 0 : index
      %c0_30 = arith.constant 0 : index
      %36 = vector.load %arg7[%c0_28, %c0_29, %c0_30] : memref<1x16x1xf32, #tpu.memory_space<vmem>>, vector<1x16x1xf32>
      %37 = vector.shape_cast %36 : vector<1x16x1xf32> to vector<16x1xf32>
      %38 = vector.shape_cast %35 : vector<16x1xf32> to vector<1x16x1xf32>
      tpu.vector_store %arg7[%c0_28, %c0_29, %c0_30], %38 {strides = array<i32>} : memref<1x16x1xf32, #tpu.memory_space<vmem>>, vector<1x16x1xf32>,
      %cst_31 = arith.constant 0.000000e+00 : f32
      %39 = vector.broadcast %cst_31 : f32 to vector<16x1xf32>
      %c0_32 = arith.constant 0 : index
      %c0_33 = arith.constant 0 : index
      %c0_34 = arith.constant 0 : index
      %40 = vector.load %arg8[%c0_32, %c0_33, %c0_34] : memref<1x16x1xf32, #tpu.memory_space<vmem>>, vector<1x16x1xf32>
      %41 = vector.shape_cast %40 : vector<1x16x1xf32> to vector<16x1xf32>
      %42 = vector.shape_cast %39 : vector<16x1xf32> to vector<1x16x1xf32>
      tpu.vector_store %arg8[%c0_32, %c0_33, %c0_34], %42 {strides = array<i32>} : memref<1x16x1xf32, #tpu.memory_space<vmem>>, vector<1x16x1xf32>,
    } else {
    }
    %c0 = arith.constant 0 : index
    %c0_1 = arith.constant 0 : index
    %c0_2 = arith.constant 0 : index
    %3 = vector.load %arg2[%c0, %c0_1, %c0_2] : memref<1x4x256xf32, #tpu.memory_space<vmem>>, vector<1x4x256xf32>
    %4 = vector.shape_cast %3 : vector<1x4x256xf32> to vector<4x256xf32>
    %c0_3 = arith.constant 0 : index
    %c0_4 = arith.constant 0 : index
    %5 = vector.load %arg3[%c0_3, %c0_4] : memref<4x1xf32, #tpu.memory_space<vmem>>, vector<4x1xf32>
    %6 = vector.broadcast %5 : vector<4x1xf32> to vector<4x256xf32>
    %7 = arith.mulf %4, %6 : vector<4x256xf32>
    %c0_5 = arith.constant 0 : index
    %c0_6 = arith.constant 0 : index
    %8 = vector.load %arg4[%c0_5, %c0_6] : memref<4x1xf32, #tpu.memory_space<vmem>>, vector<4x1xf32>
    %9 = vector.broadcast %8 : vector<4x1xf32> to vector<4x256xf32>
    %10 = arith.addf %7, %9 : vector<4x256xf32>
    %cst = arith.constant 0.000000e+00 : f32
    %11 = vector.broadcast %cst : f32 to vector<4x256xf32>
    %12 = arith.maximumf %10, %11 : vector<4x256xf32>
    %c0_7 = arith.constant 0 : index
    %c0_8 = arith.constant 0 : index
    %13 = vector.load %arg5[%c0_7, %c0_8] : memref<16x4xf32, #tpu.memory_space<vmem>>, vector<16x4xf32>
    %cst_9 = arith.constant dense<0.000000e+00> : vector<16x256xf32>
    %14 = tpu.matmul %13, %12, %cst_9 {dimension_numbers = #tpu.dot_dimension_numbers<[1], [0], [0], [1], [0, 0, 1, 1], [], []>} : vector<16x4xf32>, vector<4x256xf32>, vector<16x256xf32> -> vector<16x256xf32>
    %c0_10 = arith.constant 0 : index
    %c0_11 = arith.constant 0 : index
    %c0_12 = arith.constant 0 : index
    %15 = vector.load %arg6[%c0_10, %c0_11, %c0_12] : memref<1x16x256xf32, #tpu.memory_space<vmem>>, vector<1x16x256xf32>
    %16 = vector.shape_cast %15 : vector<1x16x256xf32> to vector<16x256xf32>
    %17 = vector.shape_cast %14 : vector<16x256xf32> to vector<1x16x256xf32>
    tpu.vector_store %arg6[%c0_10, %c0_11, %c0_12], %17 {strides = array<i32>} : memref<1x16x256xf32, #tpu.memory_space<vmem>>, vector<1x16x256xf32>,
    %c0_13 = arith.constant 0 : index
    %c0_14 = arith.constant 0 : index
    %c0_15 = arith.constant 0 : index
    %18 = vector.load %arg7[%c0_13, %c0_14, %c0_15] : memref<1x16x1xf32, #tpu.memory_space<vmem>>, vector<1x16x1xf32>
    %19 = vector.shape_cast %18 : vector<1x16x1xf32> to vector<16x1xf32>
    %cst_16 = arith.constant dense<0.000000e+00> : vector<16xf32>
    %20 = vector.multi_reduction <add>, %14, %cst_16 [1] : vector<16x256xf32> to vector<16xf32>
    %21 = vector.shape_cast %20 : vector<16xf32> to vector<16x1xf32>
    %22 = arith.addf %19, %21 : vector<16x1xf32>
    %c0_17 = arith.constant 0 : index
    %c0_18 = arith.constant 0 : index
    %c0_19 = arith.constant 0 : index
    %23 = vector.load %arg7[%c0_17, %c0_18, %c0_19] : memref<1x16x1xf32, #tpu.memory_space<vmem>>, vector<1x16x1xf32>
    %24 = vector.shape_cast %23 : vector<1x16x1xf32> to vector<16x1xf32>
    %25 = vector.shape_cast %22 : vector<16x1xf32> to vector<1x16x1xf32>
    tpu.vector_store %arg7[%c0_17, %c0_18, %c0_19], %25 {strides = array<i32>} : memref<1x16x1xf32, #tpu.memory_space<vmem>>, vector<1x16x1xf32>,
    %c0_20 = arith.constant 0 : index
    %c0_21 = arith.constant 0 : index
    %c0_22 = arith.constant 0 : index
    %26 = vector.load %arg8[%c0_20, %c0_21, %c0_22] : memref<1x16x1xf32, #tpu.memory_space<vmem>>, vector<1x16x1xf32>
    %27 = vector.shape_cast %26 : vector<1x16x1xf32> to vector<16x1xf32>
    %28 = arith.mulf %14, %14 : vector<16x256xf32>
    %cst_23 = arith.constant dense<0.000000e+00> : vector<16xf32>
    %29 = vector.multi_reduction <add>, %28, %cst_23 [1] : vector<16x256xf32> to vector<16xf32>
    %30 = vector.shape_cast %29 : vector<16xf32> to vector<16x1xf32>
    %31 = arith.addf %27, %30 : vector<16x1xf32>
    %c0_24 = arith.constant 0 : index
    %c0_25 = arith.constant 0 : index
    %c0_26 = arith.constant 0 : index
    %32 = vector.load %arg8[%c0_24, %c0_25, %c0_26] : memref<1x16x1xf32, #tpu.memory_space<vmem>>, vector<1x16x1xf32>
    %33 = vector.shape_cast %32 : vector<1x16x1xf32> to vector<16x1xf32>
    %34 = vector.shape_cast %31 : vector<16x1xf32> to vector<1x16x1xf32>
    tpu.vector_store %arg8[%c0_24, %c0_25, %c0_26], %34 {strides = array<i32>} : memref<1x16x1xf32, #tpu.memory_space<vmem>>, vector<1x16x1xf32>,
    return
  }
  func.func @transform_0(%arg0: i32, %arg1: i32) -> (i32, i32, i32) {
    %c1_i32 = arith.constant 1 : i32
    %0 = arith.muli %arg0, %c1_i32 : i32
    %1 = arith.addi %0, %arg1 : i32
    %c0_i32 = arith.constant 0 : i32
    %c0_i32_0 = arith.constant 0 : i32
    %c0_i32_1 = arith.constant 0 : i32
    return %1, %c0_i32, %c0_i32_0 : i32, i32, i32
  }
  func.func @transform_1(%arg0: i32, %arg1: i32) -> (i32, i32) {
    %c0_i32 = arith.constant 0 : i32
    %c0_i32_0 = arith.constant 0 : i32
    %c0_i32_1 = arith.constant 0 : i32
    return %c0_i32, %c0_i32_0 : i32, i32
  }
  func.func @transform_2(%arg0: i32, %arg1: i32) -> (i32, i32) {
    %c0_i32 = arith.constant 0 : i32
    %c0_i32_0 = arith.constant 0 : i32
    %c0_i32_1 = arith.constant 0 : i32
    return %c0_i32, %c0_i32_0 : i32, i32
  }
  func.func @transform_3(%arg0: i32, %arg1: i32) -> (i32, i32) {
    %c0_i32 = arith.constant 0 : i32
    %c0_i32_0 = arith.constant 0 : i32
    %c0_i32_1 = arith.constant 0 : i32
    return %c0_i32, %c0_i32_0 : i32, i32
  }
  func.func @transform_4(%arg0: i32, %arg1: i32) -> (i32, i32, i32) {
    %c1_i32 = arith.constant 1 : i32
    %0 = arith.muli %arg0, %c1_i32 : i32
    %1 = arith.addi %0, %arg1 : i32
    %c0_i32 = arith.constant 0 : i32
    %c0_i32_0 = arith.constant 0 : i32
    %c0_i32_1 = arith.constant 0 : i32
    return %1, %c0_i32, %c0_i32_0 : i32, i32, i32
  }
  func.func @transform_5(%arg0: i32, %arg1: i32) -> (i32, i32, i32) {
    %c0_i32 = arith.constant 0 : i32
    %c0_i32_0 = arith.constant 0 : i32
    %c0_i32_1 = arith.constant 0 : i32
    return %arg0, %c0_i32, %c0_i32_0 : i32, i32, i32
  }
  func.func @transform_6(%arg0: i32, %arg1: i32) -> (i32, i32, i32) {
    %c0_i32 = arith.constant 0 : i32
    %c0_i32_0 = arith.constant 0 : i32
    %c0_i32_1 = arith.constant 0 : i32
    return %arg0, %c0_i32, %c0_i32_0 : i32, i32, i32
  }
}

module attributes {stable_mosaic.version = 11 : i64} {
  func.func @_bn2_relu_conv2_concat_kernel(%arg0: i32, %arg1: memref<1x4x256xf32, #tpu.memory_space<vmem>>, %arg2: memref<1x16x256xf32, #tpu.memory_space<vmem>>, %arg3: memref<16x1xf32, #tpu.memory_space<vmem>>, %arg4: memref<16x1xf32, #tpu.memory_space<vmem>>, %arg5: memref<36x16xf32, #tpu.memory_space<vmem>>, %arg6: memref<9x256xf32, #tpu.memory_space<vmem>>, %arg7: memref<1x8x256xf32, #tpu.memory_space<vmem>>) attributes {dimension_semantics = [#tpu.dimension_semantics<parallel>], iteration_bounds = array<i64: 2>, scalar_prefetch = 0 : i64, scratch_operands = 0 : i64, tpu.core_type = #tpu.core_type<tc>, window_params = [{transform_indices = @transform_0, window_bounds = array<i64: 1, 4, 256>}, {transform_indices = @transform_1, window_bounds = array<i64: 1, 16, 256>}, {pipeline_mode = #tpu.pipeline_mode<synchronous>, transform_indices = @transform_2, window_bounds = array<i64: 16, 1>}, {pipeline_mode = #tpu.pipeline_mode<synchronous>, transform_indices = @transform_3, window_bounds = array<i64: 16, 1>}, {pipeline_mode = #tpu.pipeline_mode<synchronous>, transform_indices = @transform_4, window_bounds = array<i64: 36, 16>}, {pipeline_mode = #tpu.pipeline_mode<synchronous>, transform_indices = @transform_5, window_bounds = array<i64: 9, 256>}, {transform_indices = @transform_6, window_bounds = array<i64: 1, 8, 256>}]} {
    %c0 = arith.constant 0 : index
    %c0_0 = arith.constant 0 : index
    %c0_1 = arith.constant 0 : index
    %0 = vector.load %arg2[%c0, %c0_0, %c0_1] : memref<1x16x256xf32, #tpu.memory_space<vmem>>, vector<1x16x256xf32>
    %1 = vector.shape_cast %0 : vector<1x16x256xf32> to vector<16x256xf32>
    %c0_2 = arith.constant 0 : index
    %c0_3 = arith.constant 0 : index
    %2 = vector.load %arg3[%c0_2, %c0_3] : memref<16x1xf32, #tpu.memory_space<vmem>>, vector<16x1xf32>
    %3 = vector.broadcast %2 : vector<16x1xf32> to vector<16x256xf32>
    %4 = arith.mulf %1, %3 : vector<16x256xf32>
    %c0_4 = arith.constant 0 : index
    %c0_5 = arith.constant 0 : index
    %5 = vector.load %arg4[%c0_4, %c0_5] : memref<16x1xf32, #tpu.memory_space<vmem>>, vector<16x1xf32>
    %6 = vector.broadcast %5 : vector<16x1xf32> to vector<16x256xf32>
    %7 = arith.addf %4, %6 : vector<16x256xf32>
    %cst = arith.constant 0.000000e+00 : f32
    %8 = vector.broadcast %cst : f32 to vector<16x256xf32>
    %9 = arith.maximumf %7, %8 : vector<16x256xf32>
    %c0_6 = arith.constant 0 : index
    %c0_7 = arith.constant 0 : index
    %10 = vector.load %arg5[%c0_6, %c0_7] : memref<36x16xf32, #tpu.memory_space<vmem>>, vector<36x16xf32>
    %cst_8 = arith.constant dense<0.000000e+00> : vector<36x256xf32>
    %11 = tpu.matmul %10, %9, %cst_8 {dimension_numbers = #tpu.dot_dimension_numbers<[1], [0], [0], [1], [0, 0, 1, 1], [], []>} : vector<36x16xf32>, vector<16x256xf32>, vector<36x256xf32> -> vector<36x256xf32>
    %c0_9 = arith.constant 0 : index
    %c0_10 = arith.constant 0 : index
    %12 = vector.load %arg6[%c0_9, %c0_10] : memref<9x256xf32, #tpu.memory_space<vmem>>, vector<9x256xf32>
    %cst_11 = arith.constant 0.000000e+00 : f32
    %13 = vector.broadcast %cst_11 : f32 to vector<4x256xf32>
    %14 = vector.extract_strided_slice %11 {offsets = [0, 0], sizes = [4, 256], strides = [1, 1]} : vector<36x256xf32> to vector<4x256xf32>
    %15 = vector.extract_strided_slice %14 {offsets = [0, 239], sizes = [4, 17], strides = [1, 1]} : vector<4x256xf32> to vector<4x17xf32>
    %16 = vector.extract_strided_slice %14 {offsets = [0, 0], sizes = [4, 239], strides = [1, 1]} : vector<4x256xf32> to vector<4x239xf32>
    %17 = tpu.concatenate %15, %16 in 1 : vector<4x17xf32>, vector<4x239xf32> -> vector<4x256xf32>
    %18 = vector.extract_strided_slice %12 {offsets = [0, 0], sizes = [1, 256], strides = [1, 1]} : vector<9x256xf32> to vector<1x256xf32>
    %19 = vector.broadcast %18 : vector<1x256xf32> to vector<4x256xf32>
    %20 = arith.mulf %17, %19 : vector<4x256xf32>
    %21 = arith.addf %13, %20 : vector<4x256xf32>
    %22 = vector.extract_strided_slice %11 {offsets = [4, 0], sizes = [4, 256], strides = [1, 1]} : vector<36x256xf32> to vector<4x256xf32>
    %23 = vector.extract_strided_slice %22 {offsets = [0, 240], sizes = [4, 16], strides = [1, 1]} : vector<4x256xf32> to vector<4x16xf32>
    %24 = vector.extract_strided_slice %22 {offsets = [0, 0], sizes = [4, 240], strides = [1, 1]} : vector<4x256xf32> to vector<4x240xf32>
    %25 = tpu.concatenate %23, %24 in 1 : vector<4x16xf32>, vector<4x240xf32> -> vector<4x256xf32>
    %26 = vector.extract_strided_slice %12 {offsets = [1, 0], sizes = [1, 256], strides = [1, 1]} : vector<9x256xf32> to vector<1x256xf32>
    %27 = vector.broadcast %26 : vector<1x256xf32> to vector<4x256xf32>
    %28 = arith.mulf %25, %27 : vector<4x256xf32>
    %29 = arith.addf %21, %28 : vector<4x256xf32>
    %30 = vector.extract_strided_slice %11 {offsets = [8, 0], sizes = [4, 256], strides = [1, 1]} : vector<36x256xf32> to vector<4x256xf32>
    %31 = vector.extract_strided_slice %30 {offsets = [0, 241], sizes = [4, 15], strides = [1, 1]} : vector<4x256xf32> to vector<4x15xf32>
    %32 = vector.extract_strided_slice %30 {offsets = [0, 0], sizes = [4, 241], strides = [1, 1]} : vector<4x256xf32> to vector<4x241xf32>
    %33 = tpu.concatenate %31, %32 in 1 : vector<4x15xf32>, vector<4x241xf32> -> vector<4x256xf32>
    %34 = vector.extract_strided_slice %12 {offsets = [2, 0], sizes = [1, 256], strides = [1, 1]} : vector<9x256xf32> to vector<1x256xf32>
    %35 = vector.broadcast %34 : vector<1x256xf32> to vector<4x256xf32>
    %36 = arith.mulf %33, %35 : vector<4x256xf32>
    %37 = arith.addf %29, %36 : vector<4x256xf32>
    %38 = vector.extract_strided_slice %11 {offsets = [12, 0], sizes = [4, 256], strides = [1, 1]} : vector<36x256xf32> to vector<4x256xf32>
    %39 = vector.extract_strided_slice %38 {offsets = [0, 255], sizes = [4, 1], strides = [1, 1]} : vector<4x256xf32> to vector<4x1xf32>
    %40 = vector.extract_strided_slice %38 {offsets = [0, 0], sizes = [4, 255], strides = [1, 1]} : vector<4x256xf32> to vector<4x255xf32>
    %41 = tpu.concatenate %39, %40 in 1 : vector<4x1xf32>, vector<4x255xf32> -> vector<4x256xf32>
    %42 = vector.extract_strided_slice %12 {offsets = [3, 0], sizes = [1, 256], strides = [1, 1]} : vector<9x256xf32> to vector<1x256xf32>
    %43 = vector.broadcast %42 : vector<1x256xf32> to vector<4x256xf32>
    %44 = arith.mulf %41, %43 : vector<4x256xf32>
    %45 = arith.addf %37, %44 : vector<4x256xf32>
    %46 = vector.extract_strided_slice %11 {offsets = [16, 0], sizes = [4, 256], strides = [1, 1]} : vector<36x256xf32> to vector<4x256xf32>
    %47 = vector.extract_strided_slice %12 {offsets = [4, 0], sizes = [1, 256], strides = [1, 1]} : vector<9x256xf32> to vector<1x256xf32>
    %48 = vector.broadcast %47 : vector<1x256xf32> to vector<4x256xf32>
    %49 = arith.mulf %46, %48 : vector<4x256xf32>
    %50 = arith.addf %45, %49 : vector<4x256xf32>
    %51 = vector.extract_strided_slice %11 {offsets = [20, 0], sizes = [4, 256], strides = [1, 1]} : vector<36x256xf32> to vector<4x256xf32>
    %52 = vector.extract_strided_slice %51 {offsets = [0, 1], sizes = [4, 255], strides = [1, 1]} : vector<4x256xf32> to vector<4x255xf32>
    %53 = vector.extract_strided_slice %51 {offsets = [0, 0], sizes = [4, 1], strides = [1, 1]} : vector<4x256xf32> to vector<4x1xf32>
    %54 = tpu.concatenate %52, %53 in 1 : vector<4x255xf32>, vector<4x1xf32> -> vector<4x256xf32>
    %55 = vector.extract_strided_slice %12 {offsets = [5, 0], sizes = [1, 256], strides = [1, 1]} : vector<9x256xf32> to vector<1x256xf32>
    %56 = vector.broadcast %55 : vector<1x256xf32> to vector<4x256xf32>
    %57 = arith.mulf %54, %56 : vector<4x256xf32>
    %58 = arith.addf %50, %57 : vector<4x256xf32>
    %59 = vector.extract_strided_slice %11 {offsets = [24, 0], sizes = [4, 256], strides = [1, 1]} : vector<36x256xf32> to vector<4x256xf32>
    %60 = vector.extract_strided_slice %59 {offsets = [0, 15], sizes = [4, 241], strides = [1, 1]} : vector<4x256xf32> to vector<4x241xf32>
    %61 = vector.extract_strided_slice %59 {offsets = [0, 0], sizes = [4, 15], strides = [1, 1]} : vector<4x256xf32> to vector<4x15xf32>
    %62 = tpu.concatenate %60, %61 in 1 : vector<4x241xf32>, vector<4x15xf32> -> vector<4x256xf32>
    %63 = vector.extract_strided_slice %12 {offsets = [6, 0], sizes = [1, 256], strides = [1, 1]} : vector<9x256xf32> to vector<1x256xf32>
    %64 = vector.broadcast %63 : vector<1x256xf32> to vector<4x256xf32>
    %65 = arith.mulf %62, %64 : vector<4x256xf32>
    %66 = arith.addf %58, %65 : vector<4x256xf32>
    %67 = vector.extract_strided_slice %11 {offsets = [28, 0], sizes = [4, 256], strides = [1, 1]} : vector<36x256xf32> to vector<4x256xf32>
    %68 = vector.extract_strided_slice %67 {offsets = [0, 16], sizes = [4, 240], strides = [1, 1]} : vector<4x256xf32> to vector<4x240xf32>
    %69 = vector.extract_strided_slice %67 {offsets = [0, 0], sizes = [4, 16], strides = [1, 1]} : vector<4x256xf32> to vector<4x16xf32>
    %70 = tpu.concatenate %68, %69 in 1 : vector<4x240xf32>, vector<4x16xf32> -> vector<4x256xf32>
    %71 = vector.extract_strided_slice %12 {offsets = [7, 0], sizes = [1, 256], strides = [1, 1]} : vector<9x256xf32> to vector<1x256xf32>
    %72 = vector.broadcast %71 : vector<1x256xf32> to vector<4x256xf32>
    %73 = arith.mulf %70, %72 : vector<4x256xf32>
    %74 = arith.addf %66, %73 : vector<4x256xf32>
    %75 = vector.extract_strided_slice %11 {offsets = [32, 0], sizes = [4, 256], strides = [1, 1]} : vector<36x256xf32> to vector<4x256xf32>
    %76 = vector.extract_strided_slice %75 {offsets = [0, 17], sizes = [4, 239], strides = [1, 1]} : vector<4x256xf32> to vector<4x239xf32>
    %77 = vector.extract_strided_slice %75 {offsets = [0, 0], sizes = [4, 17], strides = [1, 1]} : vector<4x256xf32> to vector<4x17xf32>
    %78 = tpu.concatenate %76, %77 in 1 : vector<4x239xf32>, vector<4x17xf32> -> vector<4x256xf32>
    %79 = vector.extract_strided_slice %12 {offsets = [8, 0], sizes = [1, 256], strides = [1, 1]} : vector<9x256xf32> to vector<1x256xf32>
    %80 = vector.broadcast %79 : vector<1x256xf32> to vector<4x256xf32>
    %81 = arith.mulf %78, %80 : vector<4x256xf32>
    %82 = arith.addf %74, %81 : vector<4x256xf32>
    %c0_12 = arith.constant 0 : index
    %c0_13 = arith.constant 0 : index
    %c0_14 = arith.constant 0 : index
    %83 = vector.load %arg1[%c0_12, %c0_13, %c0_14] : memref<1x4x256xf32, #tpu.memory_space<vmem>>, vector<1x4x256xf32>
    %84 = vector.shape_cast %83 : vector<1x4x256xf32> to vector<4x256xf32>
    %c0_15 = arith.constant 0 : index
    %c0_16 = arith.constant 0 : index
    %c0_17 = arith.constant 0 : index
    %85 = vector.load %arg7[%c0_15, %c0_16, %c0_17] : memref<1x8x256xf32, #tpu.memory_space<vmem>>, vector<1x4x256xf32>
    %86 = vector.shape_cast %85 : vector<1x4x256xf32> to vector<4x256xf32>
    %87 = vector.shape_cast %84 : vector<4x256xf32> to vector<1x4x256xf32>
    tpu.vector_store %arg7[%c0_15, %c0_16, %c0_17], %87 {strides = array<i32>} : memref<1x8x256xf32, #tpu.memory_space<vmem>>, vector<1x4x256xf32>,
    %c0_18 = arith.constant 0 : index
    %c4 = arith.constant 4 : index
    %c0_19 = arith.constant 0 : index
    %88 = vector.load %arg7[%c0_18, %c4, %c0_19] : memref<1x8x256xf32, #tpu.memory_space<vmem>>, vector<1x4x256xf32>
    %89 = vector.shape_cast %88 : vector<1x4x256xf32> to vector<4x256xf32>
    %90 = vector.shape_cast %82 : vector<4x256xf32> to vector<1x4x256xf32>
    tpu.vector_store %arg7[%c0_18, %c4, %c0_19], %90 {strides = array<i32>} : memref<1x8x256xf32, #tpu.memory_space<vmem>>, vector<1x4x256xf32>,
    return
  }
  func.func @transform_0(%arg0: i32) -> (i32, i32, i32) {
    %c0_i32 = arith.constant 0 : i32
    %c0_i32_0 = arith.constant 0 : i32
    %c0_i32_1 = arith.constant 0 : i32
    return %arg0, %c0_i32, %c0_i32_0 : i32, i32, i32
  }
  func.func @transform_1(%arg0: i32) -> (i32, i32, i32) {
    %c0_i32 = arith.constant 0 : i32
    %c0_i32_0 = arith.constant 0 : i32
    %c0_i32_1 = arith.constant 0 : i32
    return %arg0, %c0_i32, %c0_i32_0 : i32, i32, i32
  }
  func.func @transform_2(%arg0: i32) -> (i32, i32) {
    %c0_i32 = arith.constant 0 : i32
    %c0_i32_0 = arith.constant 0 : i32
    %c0_i32_1 = arith.constant 0 : i32
    return %c0_i32, %c0_i32_0 : i32, i32
  }
  func.func @transform_3(%arg0: i32) -> (i32, i32) {
    %c0_i32 = arith.constant 0 : i32
    %c0_i32_0 = arith.constant 0 : i32
    %c0_i32_1 = arith.constant 0 : i32
    return %c0_i32, %c0_i32_0 : i32, i32
  }
  func.func @transform_4(%arg0: i32) -> (i32, i32) {
    %c0_i32 = arith.constant 0 : i32
    %c0_i32_0 = arith.constant 0 : i32
    %c0_i32_1 = arith.constant 0 : i32
    return %c0_i32, %c0_i32_0 : i32, i32
  }
  func.func @transform_5(%arg0: i32) -> (i32, i32) {
    %c0_i32 = arith.constant 0 : i32
    %c0_i32_0 = arith.constant 0 : i32
    %c0_i32_1 = arith.constant 0 : i32
    return %c0_i32, %c0_i32_0 : i32, i32
  }
  func.func @transform_6(%arg0: i32) -> (i32, i32, i32) {
    %c0_i32 = arith.constant 0 : i32
    %c0_i32_0 = arith.constant 0 : i32
    %c0_i32_1 = arith.constant 0 : i32
    return %arg0, %c0_i32, %c0_i32_0 : i32, i32, i32
  }
}

</mosaic_0001>

<llo_original>
// kernel: bottleneck_forward.4
$region0: #{bottleneck_forward.4}
  #allocation0 [shape = 'u32[]', space=smem, size = 0x4, offset = 0x4, fixed_abs, tag = 'smem constant byte address 0x4 - core index']
  #allocation1 [shape = 'u32[72,128]{1,0:T(1,128)}', space=vmem, size = 0x9000, scoped, tag = 'internal scratch']
  %s0 = inlined_call_operand.vmem [shape: f32[2,4,256], index: 0, kind: input, shape index: {}]
  %s1 = inlined_call_operand.vmem [shape: f32[4,1], index: 1, kind: input, shape index: {}]
  %s2 = inlined_call_operand.vmem [shape: f32[4,1], index: 2, kind: input, shape index: {}]
  %s3 = inlined_call_operand.vmem [shape: f32[16,4], index: 3, kind: input, shape index: {}]
  %s4 = inlined_call_operand.vmem [shape: f32[2,16,256], index: 4, kind: output, shape index: {0}]
  %s5 = inlined_call_operand.vmem [shape: f32[2,16,1], index: 5, kind: output, shape index: {1}]
  %s6 = inlined_call_operand.vmem [shape: f32[2,16,1], index: 6, kind: output, shape index: {2}]
  %7 = xla_tuple %s4, %s5, %s6
  %s8 = sld [smem:[#allocation0]]
  $region69: #{bottleneck_forward.4} parent=0
    _
  %s10 = ssub.s32 1, %s8
  %s11 = scalar_select 0, %s10, %s8
  loop: start=0, step=1, limit=4
  $region2: #{bottleneck_forward.4} parent=0 // loop_pre_header
    _
  $region3: #{bottleneck_forward.4} parent=0 // loop_header
    %s13 = sphi 0, %s17
    %p14 = scmp.ge.s32.totalorder %s13, 4
    %s20 = sphi 0, %s32
    %s21 = sphi 0, %s28
    %s22 = sphi 0, %s20
    %s23 = sphi 0, %s21
    %s24 = sphi 0, %s22
    %s25 = sphi 0, %s23
    %s37 = sphi 0, %s39
    %s40 = sphi 0, %s37
    %s41 = sphi 0, %s40
    %s57 = sphi 0, %s41
    %s61 = sphi 0, %s61
    %s63 = sphi 0, %s61
    %s64 = sphi 0, %s63
    %s78 = sphi 0, %s64
    %s82 = sphi 0, %s82
    %s84 = sphi 0, %s82
    %s85 = sphi 0, %s84
    %s99 = sphi 0, %s85
    %s103 = sphi 0, %s103
    %s105 = sphi 0, %s103
    %s106 = sphi 0, %s105
    %s120 = sphi 0, %s106
    %s128 = sphi 0, %s130
    %s131 = sphi 0, %s128
    %s132 = sphi 0, %s131
    %s148 = sphi 0, %s132
    %s154 = sphi 0, %s156
    %s157 = sphi 0, %s154
    %s158 = sphi 0, %s157
    %s174 = sphi 0, %s158
    %s180 = sphi 0, %s182
    %s183 = sphi 0, %s180
    %s184 = sphi 0, %s183
    %s200 = sphi 0, %s184
  $region4: #{bottleneck_forward.4} parent=0 // loop_header_branch
    %16 = sbr.rel (%p14) target = $region8
  $region5: #{bottleneck_forward.4} parent=0 // loop_body
    %s18 = ssub.s32 %s13, 1
    %s19 = ssub.s32 %s13, 2
    %s26 = sadd.s32 1, %s21
    %p27 = scmp.ge.s32.totalorder %s26, 1
    %s28 = scalar_select %p27, 0, %s26
    %s29 = sadd.s32 1, %s20
    %s30 = scalar_select %p27, %s29, %s20
    %p31 = scmp.ge.s32.totalorder %s30, 2
    %s32 = scalar_select %p31, 0, %s30
    %s33 = sadd.s32 %s20, %s21
    %s34 = sadd.s32 %s32, %s28
    %s35 = ssub.s32 %s33, %s34
    %p36 = scmp.eq.s32.totalorder %s35, 0
    %s38 = sadd.s32 %s37, 1
    %s39 = scalar_select %p36, %s37, %s38
    %p42 = pneg %p36
    %p43 = scmp.eq.s32.totalorder %s13, 1
    %p44 = por %p42, %p43
    %p45 = scmp.ne.s32.totalorder %s37, %s40
    %p46 = scmp.eq.s32.totalorder %s13, 0
    %p47 = por %p45, %p46
    %p48 = scmp.ne.s32.totalorder %s37, %s40
    %p49 = scmp.eq.s32.totalorder %s18, 1
    %p50 = por %p48, %p49
    %p51 = scmp.ne.s32.totalorder %s40, %s41
    %p52 = scmp.eq.s32.totalorder %s18, 0
    %p53 = por %p51, %p52
    %p54 = scmp.ne.s32.totalorder %s40, %s41
    %p55 = scmp.eq.s32.totalorder %s19, 1
    %p56 = por %p54, %p55
    %p58 = scmp.ne.s32.totalorder %s41, %s57
    %p59 = scmp.eq.s32.totalorder %s19, 0
    %p60 = por %p58, %p59
    %s62 = sadd.s32 %s61, 1
    %p65 = scmp.eq.s32.totalorder %s13, 1
    %p66 = scmp.ne.s32.totalorder %s61, %s63
    %p67 = scmp.eq.s32.totalorder %s13, 0
    %p68 = por %p66, %p67
    %p69 = scmp.ne.s32.totalorder %s61, %s63
    %p70 = scmp.eq.s32.totalorder %s18, 1
    %p71 = por %p69, %p70
    %p72 = scmp.ne.s32.totalorder %s63, %s64
    %p73 = scmp.eq.s32.totalorder %s18, 0
    %p74 = por %p72, %p73
    %p75 = scmp.ne.s32.totalorder %s63, %s64
    %p76 = scmp.eq.s32.totalorder %s19, 1
    %p77 = por %p75, %p76
    %p79 = scmp.ne.s32.totalorder %s64, %s78
    %p80 = scmp.eq.s32.totalorder %s19, 0
    %p81 = por %p79, %p80
    %s83 = sadd.s32 %s82, 1
    %p86 = scmp.eq.s32.totalorder %s13, 1
    %p87 = scmp.ne.s32.totalorder %s82, %s84
    %p88 = scmp.eq.s32.totalorder %s13, 0
    %p89 = por %p87, %p88
    %p90 = scmp.ne.s32.totalorder %s82, %s84
    %p91 = scmp.eq.s32.totalorder %s18, 1
    %p92 = por %p90, %p91
    %p93 = scmp.ne.s32.totalorder %s84, %s85
    %p94 = scmp.eq.s32.totalorder %s18, 0
    %p95 = por %p93, %p94
    %p96 = scmp.ne.s32.totalorder %s84, %s85
    %p97 = scmp.eq.s32.totalorder %s19, 1
    %p98 = por %p96, %p97
    %p100 = scmp.ne.s32.totalorder %s85, %s99
    %p101 = scmp.eq.s32.totalorder %s19, 0
    %p102 = por %p100, %p101
    %s104 = sadd.s32 %s103, 1
    %p107 = scmp.eq.s32.totalorder %s13, 1
    %p108 = scmp.ne.s32.totalorder %s103, %s105
    %p109 = scmp.eq.s32.totalorder %s13, 0
    %p110 = por %p108, %p109
    %p111 = scmp.ne.s32.totalorder %s103, %s105
    %p112 = scmp.eq.s32.totalorder %s18, 1
    %p113 = por %p111, %p112
    %p114 = scmp.ne.s32.totalorder %s105, %s106
    %p115 = scmp.eq.s32.totalorder %s18, 0
    %p116 = por %p114, %p115
    %p117 = scmp.ne.s32.totalorder %s105, %s106
    %p118 = scmp.eq.s32.totalorder %s19, 1
    %p119 = por %p117, %p118
    %p121 = scmp.ne.s32.totalorder %s106, %s120
    %p122 = scmp.eq.s32.totalorder %s19, 0
    %p123 = por %p121, %p122
    %s124 = sadd.s32 %s20, %s21
    %s125 = sadd.s32 %s32, %s28
    %s126 = ssub.s32 %s124, %s125
    %p127 = scmp.eq.s32.totalorder %s126, 0
    %s129 = sadd.s32 %s128, 1
    %s130 = scalar_select %p127, %s128, %s129
    %p133 = pneg %p127
    %p134 = scmp.eq.s32.totalorder %s13, 1
    %p135 = por %p133, %p134
    %p136 = scmp.ne.s32.totalorder %s128, %s131
    %p137 = scmp.eq.s32.totalorder %s13, 0
    %p138 = por %p136, %p137
    %p139 = scmp.ne.s32.totalorder %s128, %s131
    %p140 = scmp.eq.s32.totalorder %s18, 1
    %p141 = por %p139, %p140
    %p142 = scmp.ne.s32.totalorder %s131, %s132
    %p143 = scmp.eq.s32.totalorder %s18, 0
    %p144 = por %p142, %p143
    %p145 = scmp.ne.s32.totalorder %s131, %s132
    %p146 = scmp.eq.s32.totalorder %s19, 1
    %p147 = por %p145, %p146
    %p149 = scmp.ne.s32.totalorder %s132, %s148
    %p150 = scmp.eq.s32.totalorder %s19, 0
    %p151 = por %p149, %p150
    %s152 = ssub.s32 %s20, %s32
    %p153 = scmp.eq.s32.totalorder %s152, 0
    %s155 = sadd.s32 %s154, 1
    %s156 = scalar_select %p153, %s154, %s155
    %p159 = pneg %p153
    %p160 = scmp.eq.s32.totalorder %s13, 1
    %p161 = por %p159, %p160
    %p162 = scmp.ne.s32.totalorder %s154, %s157
    %p163 = scmp.eq.s32.totalorder %s13, 0
    %p164 = por %p162, %p163
    %p165 = scmp.ne.s32.totalorder %s154, %s157
    %p166 = scmp.eq.s32.totalorder %s18, 1
    %p167 = por %p165, %p166
    %p168 = scmp.ne.s32.totalorder %s157, %s158
    %p169 = scmp.eq.s32.totalorder %s18, 0
    %p170 = por %p168, %p169
    %p171 = scmp.ne.s32.totalorder %s157, %s158
    %p172 = scmp.eq.s32.totalorder %s19, 1
    %p173 = por %p171, %p172
    %p175 = scmp.ne.s32.totalorder %s158, %s174
    %p176 = scmp.eq.s32.totalorder %s19, 0
    %p177 = por %p175, %p176
    %s178 = ssub.s32 %s20, %s32
    %p179 = scmp.eq.s32.totalorder %s178, 0
    %s181 = sadd.s32 %s180, 1
    %s182 = scalar_select %p179, %s180, %s181
    %p185 = pneg %p179
    %p186 = scmp.eq.s32.totalorder %s13, 1
    %p187 = por %p185, %p186
    %p188 = scmp.ne.s32.totalorder %s180, %s183
    %p189 = scmp.eq.s32.totalorder %s13, 0
    %p190 = por %p188, %p189
    %p191 = scmp.ne.s32.totalorder %s180, %s183
    %p192 = scmp.eq.s32.totalorder %s18, 1
    %p193 = por %p191, %p192
    %p194 = scmp.ne.s32.totalorder %s183, %s184
    %p195 = scmp.eq.s32.totalorder %s18, 0
    %p196 = por %p194, %p195
    %p197 = scmp.ne.s32.totalorder %s183, %s184
    %p198 = scmp.eq.s32.totalorder %s19, 1
    %p199 = por %p197, %p198
    %p201 = scmp.ne.s32.totalorder %s184, %s200
    %p202 = scmp.eq.s32.totalorder %s19, 0
    %p203 = por %p201, %p202
    %p204 = scmp.le.s32.totalorder 1, %s13
    %p205 = scmp.lt.s32.totalorder %s13, 3
    %p206 = pnand %p204, %p205
    %p207 = pneg %p206
    // Predicated region
    $region9: #{bottleneck_forward.4} parent=5 // pred_check
      _
    $region10: #{bottleneck_forward.4} parent=5 // pred_check_branch
      %209 = sbr.rel (%p206) target = $region12
    $region11: #{bottleneck_forward.4} parent=5 // pred_region
      %s210 = ssub.s32 %s13, 1
      // Predicated region
      $region13: #{bottleneck_forward.4} parent=11 // pred_check
        %p211 = pneg %p74
      $region14: #{bottleneck_forward.4} parent=11 // pred_check_branch
        %213 = sbr.rel (%p211) target = $region16
      $region15: #{bottleneck_forward.4} parent=11 // pred_region
        _
      $region16: #{bottleneck_forward.4} parent=11 // pred_fallthru
        _
      // Predicated region
      $region17: #{bottleneck_forward.4} parent=11 // pred_check
        %p214 = pneg %p95
      $region18: #{bottleneck_forward.4} parent=11 // pred_check_branch
        %216 = sbr.rel (%p214) target = $region20
      $region19: #{bottleneck_forward.4} parent=11 // pred_region
        _
      $region20: #{bottleneck_forward.4} parent=11 // pred_fallthru
        _
      // Predicated region
      $region21: #{bottleneck_forward.4} parent=11 // pred_check
        %p217 = pneg %p116
      $region22: #{bottleneck_forward.4} parent=11 // pred_check_branch
        %219 = sbr.rel (%p217) target = $region24
      $region23: #{bottleneck_forward.4} parent=11 // pred_region
        _
      $region24: #{bottleneck_forward.4} parent=11 // pred_fallthru
        _
    $region12: #{bottleneck_forward.4} parent=5 // pred_fallthru
      _
    %p220 = scmp.lt.s32.totalorder %s13, 2
    // Predicated region
    $region25: #{bottleneck_forward.4} parent=5 // pred_check
      %p221 = pneg %p220
    $region26: #{bottleneck_forward.4} parent=5 // pred_check_branch
      %223 = sbr.rel (%p221) target = $region28
    $region27: #{bottleneck_forward.4} parent=5 // pred_region
      // Predicated region
      $region29: #{bottleneck_forward.4} parent=27 // pred_check
        %p224 = pneg %p47
      $region30: #{bottleneck_forward.4} parent=27 // pred_check_branch
        %226 = sbr.rel (%p224) target = $region32
      $region31: #{bottleneck_forward.4} parent=27 // pred_region
        %s227 = sadd.s32 %s20, %s21
        %p228 = scmp.lt.s32.totalorder %s227, 1
        %s229 = scalar_select %p228, %s227, 1
        %s230 = smul.addr %s229, 2
        %s231 = smul.addr %s230, 4
        %s232 = scalar_lea.vmem %s0, %s231
        %s233 = sadd.s32 %s20, %s21
      $region32: #{bottleneck_forward.4} parent=27 // pred_fallthru
        _
    $region28: #{bottleneck_forward.4} parent=5 // pred_fallthru
      _
    %p234 = scmp.le.s32.totalorder 1, %s13
    %p235 = scmp.lt.s32.totalorder %s13, 3
    %p236 = pnand %p234, %p235
    %p237 = pneg %p236
    // Predicated region
    $region33: #{bottleneck_forward.4} parent=5 // pred_check
      _
    $region34: #{bottleneck_forward.4} parent=5 // pred_check_branch
      %239 = sbr.rel (%p236) target = $region36
    $region35: #{bottleneck_forward.4} parent=5 // pred_region
      %s240 = ssub.s32 %s13, 1
      %s241 = sadd.s32 %s22, %s23
      %p242 = scmp.lt.s32.totalorder %s241, 1
      %s243 = scalar_select %p242, %s241, 1
      %s244 = smul.addr %s243, 2
      %s245 = smul.addr %s244, 4
      %s246 = scalar_lea.vmem %s0, %s245
      %p247 = pneg %p53
      %p248 = pneg %p50
      %p249 = pneg %p74
      %p250 = pneg %p71
      %p251 = pneg %p95
      %p252 = pneg %p92
      %p253 = pneg %p116
      %p254 = pneg %p113
      %p255 = pneg %p144
      %p256 = pneg %p141
      %s257 = sadd.s32 %s22, %s23
      %p258 = scmp.lt.s32.totalorder %s257, 1
      %s259 = scalar_select %p258, %s257, 1
      %s260 = smul.addr %s259, 4
      %s261 = smul.addr %s260, 8
      %s262 = scalar_lea.vmem %s4, %s261
      %p263 = pneg %p170
      %p264 = pneg %p167
      %p265 = scmp.lt.s32.totalorder %s22, 1
      %s266 = scalar_select %p265, %s22, 1
      %s267 = smul.addr %s266, 2
      %s268 = smul.addr %s267, 8
      %s269 = scalar_lea.vmem %s5, %s268
      %p270 = pneg %p196
      %p271 = pneg %p193
      %p272 = scmp.lt.s32.totalorder %s22, 1
      %s273 = scalar_select %p272, %s22, 1
      %s274 = smul.addr %s273, 2
      %s275 = smul.addr %s274, 8
      %s276 = scalar_lea.vmem %s6, %s275
      %s277 = sadd.s32 %s22, %s23
      %p278 = scmp.lt.s32.totalorder %s277, 1
      %s279 = scalar_select %p278, %s277, 1
      %s280 = smul.addr %s279, 2
      %s281 = smul.addr %s280, 4
      %s282 = scalar_lea.vmem %s0, %s281
      %s283 = sadd.s32 %s22, %s23
      %s284 = sadd.s32 %s22, %s23
      %p285 = scmp.lt.s32.totalorder %s284, 1
      %s286 = scalar_select %p285, %s284, 1
      %s287 = smul.addr %s286, 4
      %s288 = smul.addr %s287, 8
      %s289 = scalar_lea.vmem %s4, %s288
      %s290 = sadd.s32 %s22, %s23
      %p291 = scmp.lt.s32.totalorder %s22, 1
      %s292 = scalar_select %p291, %s22, 1
      %s293 = smul.addr %s292, 2
      %s294 = smul.addr %s293, 8
      %s295 = scalar_lea.vmem %s5, %s294
      %p296 = scmp.lt.s32.totalorder %s22, 1
      %s297 = scalar_select %p296, %s22, 1
      %s298 = smul.addr %s297, 2
      %s299 = smul.addr %s298, 8
      %s300 = scalar_lea.vmem %s6, %s299
      %p301 = scmp.eq.s32.totalorder %s23, 0
      // Predicated region
      $region37: #{bottleneck_forward.4} parent=35 // pred_check
        %p302 = pneg %p301
      $region38: #{bottleneck_forward.4} parent=35 // pred_check_branch
        %304 = sbr.rel (%p302) target = $region40
      $region39: #{bottleneck_forward.4} parent=35 // pred_region
        %vm305 = vcmask 7168
        %306 = vst.msk [vmem:[%s295] sm:$0xff] %vm305, 0.0
        %307 = vst.msk [vmem:[%s295 + $0x8] sm:$0xff] %vm305, 0.0
        %308 = vst.msk [vmem:[%s300] sm:$0xff] %vm305, 0.0
        %309 = vst.msk [vmem:[%s300 + $0x8] sm:$0xff] %vm305, 0.0
      $region40: #{bottleneck_forward.4} parent=35 // pred_fallthru
        _
      %v310 = vld [vmem:[%s282] sm:$0xff]
      %v311 = vld [vmem:[%s1] sm:$0xf]
      %313 = vset.pattern.permute.xlu0 0
      %314 = vperm.xlu0 %313, %v311
      %v315 = vpop.permute.xlu0 %314
      %v317 = vunpack.c.l.s4 839922192
      %v318 = vunpack.c.0.s8 %v317
      %v319 = vperm.slane %v315, %v318
      %v321 = vmul.f32 %v310, %v319
      %v322 = vld [vmem:[%s2] sm:$0xf]
      %324 = vset.pattern.permute.xlu0 0
      %325 = vperm.xlu0 %324, %v322
      %v326 = vpop.permute.xlu0 %325
      %v328 = vunpack.c.l.s4 839922192
      %v329 = vunpack.c.0.s8 %v328
      %v330 = vperm.slane %v326, %v329
      %v332 = vadd.f32 %v321, %v330
      %v333 = vmax.f32 %v332, 0.0
      %v334 = vld [vmem:[%s3] sm:$0xff]
      %v335 = vld [vmem:[%s3 + $0x8] sm:$0xff]
      %337 = vst [vmem:[#allocation1] ss:$2 sm:$0xff] %v333
      %v338 = vld.sshfl [vmem:[#allocation1] sm:$0xff pattern:$0x75316420]
      %v339 = vld.sshfl [vmem:[#allocation1 + $0x8] sm:$0xff pattern:$0x75316420]
      %vm340 = vcmask 31744
      %v342 = vsel %vm340, %v334, 0
      %v345 = vsel %vm340, %v335, 0
      %vm347 = vcmask 1043456
      %v348 = vsel %vm347, %v338, 0
      %v350 = vsel %vm347, %v339, 0
      %352 = vmatpush.msra.mxu0 0.0
      %353 = vmatpush.msra.mxu0 0.0
      %354 = vmatpush.msra.mxu0 0.0
      %355 = vmatpush.msra.mxu0 0.0
      %356 = vmatpush.msra.mxu0 0.0
      %357 = vmatpush.msra.mxu0 0.0
      %358 = vmatpush.msra.mxu0 0.0
      %359 = vmatpush.msra.mxu0 0.0
      %360 = vmatpush.msra.mxu0 0.0
      %361 = vmatpush.msra.mxu0 0.0
      %362 = vmatpush.msra.mxu0 0.0
      %363 = vmatpush.msra.mxu0 0.0
      %364 = vmatpush.msra.mxu0 0.0
      %365 = vmatpush.msra.mxu0 0.0
      %366 = vmatpush.msra.mxu0 0.0
      %367 = vmatpush.msra.mxu0 %v348
      %368 = vmatmul.f32.gmra.mxu0 %v342
      %v369 = vpop.f32.mrf.mxu0
      %v370 = vadd.f32 0.0, %v369
      %371 = vmatmul.f32.gmra.mxu0 %v345
      %v372 = vpop.f32.mrf.mxu0
      %v373 = vadd.f32 0.0, %v372
      %374 = vdwg.mxu0
      %375 = vmatpush.msra.mxu0 0.0
      %376 = vmatpush.msra.mxu0 0.0
      %377 = vmatpush.msra.mxu0 0.0
      %378 = vmatpush.msra.mxu0 0.0
      %379 = vmatpush.msra.mxu0 0.0
      %380 = vmatpush.msra.mxu0 0.0
      %381 = vmatpush.msra.mxu0 0.0
      %382 = vmatpush.msra.mxu0 0.0
      %383 = vmatpush.msra.mxu0 0.0
      %384 = vmatpush.msra.mxu0 0.0
      %385 = vmatpush.msra.mxu0 0.0
      %386 = vmatpush.msra.mxu0 0.0
      %387 = vmatpush.msra.mxu0 0.0
      %388 = vmatpush.msra.mxu0 0.0
      %389 = vmatpush.msra.mxu0 0.0
      %390 = vmatpush.msra.mxu0 %v350
      %391 = vmatmul.f32.gmra.mxu0 %v342
      %v392 = vpop.f32.mrf.mxu0
      %v393 = vadd.f32 0.0, %v392
      %394 = vmatmul.f32.gmra.mxu0 %v345
      %v395 = vpop.f32.mrf.mxu0
      %v396 = vadd.f32 0.0, %v395
      %397 = vdwg.mxu0
      %398 = vst [vmem:[%s289] sm:$0xff] %v370
      %399 = vst [vmem:[%s289 + $0x8] sm:$0xff] %v393
      %400 = vst [vmem:[%s289 + $0x10] sm:$0xff] %v373
      %401 = vst [vmem:[%s289 + $0x18] sm:$0xff] %v396
      %v402 = vld [vmem:[%s295] sm:$0xff]
      %v403 = vld [vmem:[%s295 + $0x8] sm:$0xff]
      %v404 = vadd.f32 %v370, %v393
      %405 = vadd.xlane.f32.xlu0 %v404
      %v406 = vpop.xlane.xlu0 %405
      %v407 = vadd.f32 %v373, %v396
      %408 = vadd.xlane.f32.xlu0 %v407
      %v409 = vpop.xlane.xlu0 %408
      %v410 = vadd.f32 %v402, %v406
      %v411 = vadd.f32 %v403, %v409
      %vm412 = vcmask 7168
      %413 = vst.msk [vmem:[%s295] sm:$0xff] %vm412, %v410
      %414 = vst.msk [vmem:[%s295 + $0x8] sm:$0xff] %vm412, %v411
      %v415 = vld [vmem:[%s300] sm:$0xff]
      %v416 = vld [vmem:[%s300 + $0x8] sm:$0xff]
      %v417 = vmul.f32 %v370, %v370
      %v418 = vmul.f32 %v393, %v393
      %v419 = vmul.f32 %v373, %v373
      %v420 = vmul.f32 %v396, %v396
      %v421 = vadd.f32 %v417, %v418
      %422 = vadd.xlane.f32.xlu0 %v421
      %v423 = vpop.xlane.xlu0 %422
      %v424 = vadd.f32 %v419, %v420
      %425 = vadd.xlane.f32.xlu0 %v424
      %v426 = vpop.xlane.xlu0 %425
      %v427 = vadd.f32 %v415, %v423
      %v428 = vadd.f32 %v416, %v426
      %429 = vst.msk [vmem:[%s300] sm:$0xff] %vm412, %v427
      %430 = vst.msk [vmem:[%s300 + $0x8] sm:$0xff] %vm412, %v428
      %s431 = sadd.s32 %s22, %s23
      %p432 = scmp.lt.s32.totalorder %s431, 1
      %s433 = scalar_select %p432, %s431, 1
      %s434 = smul.addr %s433, 4
      %s435 = smul.addr %s434, 8
      %s436 = scalar_lea.vmem %s4, %s435
      %p437 = scmp.lt.s32.totalorder %s22, 1
      %s438 = scalar_select %p437, %s22, 1
      %s439 = smul.addr %s438, 2
      %s440 = smul.addr %s439, 8
      %s441 = scalar_lea.vmem %s5, %s440
      %p442 = scmp.lt.s32.totalorder %s22, 1
      %s443 = scalar_select %p442, %s22, 1
      %s444 = smul.addr %s443, 2
      %s445 = smul.addr %s444, 8
      %s446 = scalar_lea.vmem %s6, %s445
      // Predicated region
      $region41: #{bottleneck_forward.4} parent=35 // pred_check
        %p447 = pneg %p141
      $region42: #{bottleneck_forward.4} parent=35 // pred_check_branch
        %449 = sbr.rel (%p447) target = $region44
      $region43: #{bottleneck_forward.4} parent=35 // pred_region
        %s450 = sadd.s32 %s22, %s23
      $region44: #{bottleneck_forward.4} parent=35 // pred_fallthru
        _
      // Predicated region
      $region45: #{bottleneck_forward.4} parent=35 // pred_check
        %p451 = pneg %p167
      $region46: #{bottleneck_forward.4} parent=35 // pred_check_branch
        %453 = sbr.rel (%p451) target = $region48
      $region47: #{bottleneck_forward.4} parent=35 // pred_region
        _
      $region48: #{bottleneck_forward.4} parent=35 // pred_fallthru
        _
      // Predicated region
      $region49: #{bottleneck_forward.4} parent=35 // pred_check
        %p454 = pneg %p193
      $region50: #{bottleneck_forward.4} parent=35 // pred_check_branch
        %456 = sbr.rel (%p454) target = $region52
      $region51: #{bottleneck_forward.4} parent=35 // pred_region
        _
      $region52: #{bottleneck_forward.4} parent=35 // pred_fallthru
        _
    $region36: #{bottleneck_forward.4} parent=5 // pred_fallthru
      _
    %p457 = scmp.le.s32.totalorder 2, %s13
    // Predicated region
    $region53: #{bottleneck_forward.4} parent=5 // pred_check
      %p458 = pneg %p457
    $region54: #{bottleneck_forward.4} parent=5 // pred_check_branch
      %460 = sbr.rel (%p458) target = $region56
    $region55: #{bottleneck_forward.4} parent=5 // pred_region
      %s461 = ssub.s32 %s13, 2
      // Predicated region
      $region57: #{bottleneck_forward.4} parent=55 // pred_check
        %p462 = pneg %p147
      $region58: #{bottleneck_forward.4} parent=55 // pred_check_branch
        %464 = sbr.rel (%p462) target = $region60
      $region59: #{bottleneck_forward.4} parent=55 // pred_region
        %s465 = sadd.s32 %s24, %s25
        %p466 = scmp.lt.s32.totalorder %s465, 1
        %s467 = scalar_select %p466, %s465, 1
        %s468 = smul.addr %s467, 4
        %s469 = smul.addr %s468, 8
        %s470 = scalar_lea.vmem %s4, %s469
      $region60: #{bottleneck_forward.4} parent=55 // pred_fallthru
        _
      // Predicated region
      $region61: #{bottleneck_forward.4} parent=55 // pred_check
        %p471 = pneg %p173
      $region62: #{bottleneck_forward.4} parent=55 // pred_check_branch
        %473 = sbr.rel (%p471) target = $region64
      $region63: #{bottleneck_forward.4} parent=55 // pred_region
        %p474 = scmp.lt.s32.totalorder %s24, 1
        %s475 = scalar_select %p474, %s24, 1
        %s476 = smul.addr %s475, 2
        %s477 = smul.addr %s476, 8
        %s478 = scalar_lea.vmem %s5, %s477
      $region64: #{bottleneck_forward.4} parent=55 // pred_fallthru
        _
      // Predicated region
      $region65: #{bottleneck_forward.4} parent=55 // pred_check
        %p479 = pneg %p199
      $region66: #{bottleneck_forward.4} parent=55 // pred_check_branch
        %481 = sbr.rel (%p479) target = $region68
      $region67: #{bottleneck_forward.4} parent=55 // pred_region
        %p482 = scmp.lt.s32.totalorder %s24, 1
        %s483 = scalar_select %p482, %s24, 1
        %s484 = smul.addr %s483, 2
        %s485 = smul.addr %s484, 8
        %s486 = scalar_lea.vmem %s6, %s485
      $region68: #{bottleneck_forward.4} parent=55 // pred_fallthru
        _
    $region56: #{bottleneck_forward.4} parent=5 // pred_fallthru
      _
  $region6: #{bottleneck_forward.4} parent=0 // loop_footer
    %s17 = sadd.s32 1, %s13
  $region7: #{bottleneck_forward.4} parent=0 // loop_footer_branch
    %12 = sbr.rel target = $region3
  $region8: #{bottleneck_forward.4} parent=0 // loop_exit
    _

// kernel: bottleneck_forward.3
$region0: #{bottleneck_forward.3}
  #allocation0 [shape = 'u32[]', space=smem, size = 0x4, offset = 0x4, fixed_abs, tag = 'smem constant byte address 0x4 - core index']
  #allocation1 [shape = 'u32[72,128]{1,0:T(1,128)}', space=vmem, size = 0x9000, scoped, tag = 'internal scratch']
  %s0 = inlined_call_operand.vmem [shape: f32[2,4,256], index: 0, kind: input, shape index: {}]
  %s1 = inlined_call_operand.vmem [shape: f32[2,4,1], index: 1, kind: output, shape index: {0}]
  %s2 = inlined_call_operand.vmem [shape: f32[2,4,1], index: 2, kind: output, shape index: {1}]
  %3 = xla_tuple %s1, %s2
  %s4 = sld [smem:[#allocation0]]
  $region49: #{bottleneck_forward.3} parent=0
    _
  %s6 = ssub.s32 1, %s4
  %s7 = scalar_select 0, %s6, %s4
  loop: start=0, step=1, limit=4
  $region2: #{bottleneck_forward.3} parent=0 // loop_pre_header
    _
  $region3: #{bottleneck_forward.3} parent=0 // loop_header
    %s9 = sphi 0, %s13
    %p10 = scmp.ge.s32.totalorder %s9, 4
    %s16 = sphi 0, %s28
    %s17 = sphi 0, %s24
    %s18 = sphi 0, %s16
    %s19 = sphi 0, %s17
    %s20 = sphi 0, %s18
    %s21 = sphi 0, %s19
    %s33 = sphi 0, %s35
    %s36 = sphi 0, %s33
    %s37 = sphi 0, %s36
    %s53 = sphi 0, %s37
    %s59 = sphi 0, %s61
    %s62 = sphi 0, %s59
    %s63 = sphi 0, %s62
    %s79 = sphi 0, %s63
    %s85 = sphi 0, %s87
    %s88 = sphi 0, %s85
    %s89 = sphi 0, %s88
    %s105 = sphi 0, %s89
  $region4: #{bottleneck_forward.3} parent=0 // loop_header_branch
    %12 = sbr.rel (%p10) target = $region8
  $region5: #{bottleneck_forward.3} parent=0 // loop_body
    %s14 = ssub.s32 %s9, 1
    %s15 = ssub.s32 %s9, 2
    %s22 = sadd.s32 1, %s17
    %p23 = scmp.ge.s32.totalorder %s22, 1
    %s24 = scalar_select %p23, 0, %s22
    %s25 = sadd.s32 1, %s16
    %s26 = scalar_select %p23, %s25, %s16
    %p27 = scmp.ge.s32.totalorder %s26, 2
    %s28 = scalar_select %p27, 0, %s26
    %s29 = sadd.s32 %s16, %s17
    %s30 = sadd.s32 %s28, %s24
    %s31 = ssub.s32 %s29, %s30
    %p32 = scmp.eq.s32.totalorder %s31, 0
    %s34 = sadd.s32 %s33, 1
    %s35 = scalar_select %p32, %s33, %s34
    %p38 = pneg %p32
    %p39 = scmp.eq.s32.totalorder %s9, 1
    %p40 = por %p38, %p39
    %p41 = scmp.ne.s32.totalorder %s33, %s36
    %p42 = scmp.eq.s32.totalorder %s9, 0
    %p43 = por %p41, %p42
    %p44 = scmp.ne.s32.totalorder %s33, %s36
    %p45 = scmp.eq.s32.totalorder %s14, 1
    %p46 = por %p44, %p45
    %p47 = scmp.ne.s32.totalorder %s36, %s37
    %p48 = scmp.eq.s32.totalorder %s14, 0
    %p49 = por %p47, %p48
    %p50 = scmp.ne.s32.totalorder %s36, %s37
    %p51 = scmp.eq.s32.totalorder %s15, 1
    %p52 = por %p50, %p51
    %p54 = scmp.ne.s32.totalorder %s37, %s53
    %p55 = scmp.eq.s32.totalorder %s15, 0
    %p56 = por %p54, %p55
    %s57 = ssub.s32 %s16, %s28
    %p58 = scmp.eq.s32.totalorder %s57, 0
    %s60 = sadd.s32 %s59, 1
    %s61 = scalar_select %p58, %s59, %s60
    %p64 = pneg %p58
    %p65 = scmp.eq.s32.totalorder %s9, 1
    %p66 = por %p64, %p65
    %p67 = scmp.ne.s32.totalorder %s59, %s62
    %p68 = scmp.eq.s32.totalorder %s9, 0
    %p69 = por %p67, %p68
    %p70 = scmp.ne.s32.totalorder %s59, %s62
    %p71 = scmp.eq.s32.totalorder %s14, 1
    %p72 = por %p70, %p71
    %p73 = scmp.ne.s32.totalorder %s62, %s63
    %p74 = scmp.eq.s32.totalorder %s14, 0
    %p75 = por %p73, %p74
    %p76 = scmp.ne.s32.totalorder %s62, %s63
    %p77 = scmp.eq.s32.totalorder %s15, 1
    %p78 = por %p76, %p77
    %p80 = scmp.ne.s32.totalorder %s63, %s79
    %p81 = scmp.eq.s32.totalorder %s15, 0
    %p82 = por %p80, %p81
    %s83 = ssub.s32 %s16, %s28
    %p84 = scmp.eq.s32.totalorder %s83, 0
    %s86 = sadd.s32 %s85, 1
    %s87 = scalar_select %p84, %s85, %s86
    %p90 = pneg %p84
    %p91 = scmp.eq.s32.totalorder %s9, 1
    %p92 = por %p90, %p91
    %p93 = scmp.ne.s32.totalorder %s85, %s88
    %p94 = scmp.eq.s32.totalorder %s9, 0
    %p95 = por %p93, %p94
    %p96 = scmp.ne.s32.totalorder %s85, %s88
    %p97 = scmp.eq.s32.totalorder %s14, 1
    %p98 = por %p96, %p97
    %p99 = scmp.ne.s32.totalorder %s88, %s89
    %p100 = scmp.eq.s32.totalorder %s14, 0
    %p101 = por %p99, %p100
    %p102 = scmp.ne.s32.totalorder %s88, %s89
    %p103 = scmp.eq.s32.totalorder %s15, 1
    %p104 = por %p102, %p103
    %p106 = scmp.ne.s32.totalorder %s89, %s105
    %p107 = scmp.eq.s32.totalorder %s15, 0
    %p108 = por %p106, %p107
    %p109 = scmp.le.s32.totalorder 1, %s9
    %p110 = scmp.lt.s32.totalorder %s9, 3
    %p111 = pnand %p109, %p110
    %p112 = pneg %p111
    // Predicated region
    $region9: #{bottleneck_forward.3} parent=5 // pred_check
      _
    $region10: #{bottleneck_forward.3} parent=5 // pred_check_branch
      %114 = sbr.rel (%p111) target = $region12
    $region11: #{bottleneck_forward.3} parent=5 // pred_region
      %s115 = ssub.s32 %s9, 1
    $region12: #{bottleneck_forward.3} parent=5 // pred_fallthru
      _
    %p116 = scmp.lt.s32.totalorder %s9, 2
    // Predicated region
    $region13: #{bottleneck_forward.3} parent=5 // pred_check
      %p117 = pneg %p116
    $region14: #{bottleneck_forward.3} parent=5 // pred_check_branch
      %119 = sbr.rel (%p117) target = $region16
    $region15: #{bottleneck_forward.3} parent=5 // pred_region
      // Predicated region
      $region17: #{bottleneck_forward.3} parent=15 // pred_check
        %p120 = pneg %p43
      $region18: #{bottleneck_forward.3} parent=15 // pred_check_branch
        %122 = sbr.rel (%p120) target = $region20
      $region19: #{bottleneck_forward.3} parent=15 // pred_region
        %s123 = sadd.s32 %s16, %s17
        %p124 = scmp.lt.s32.totalorder %s123, 1
        %s125 = scalar_select %p124, %s123, 1
        %s126 = smul.addr %s125, 2
        %s127 = smul.addr %s126, 4
        %s128 = scalar_lea.vmem %s0, %s127
        %s129 = sadd.s32 %s16, %s17
      $region20: #{bottleneck_forward.3} parent=15 // pred_fallthru
        _
    $region16: #{bottleneck_forward.3} parent=5 // pred_fallthru
      _
    %p130 = scmp.le.s32.totalorder 1, %s9
    %p131 = scmp.lt.s32.totalorder %s9, 3
    %p132 = pnand %p130, %p131
    %p133 = pneg %p132
    // Predicated region
    $region21: #{bottleneck_forward.3} parent=5 // pred_check
      _
    $region22: #{bottleneck_forward.3} parent=5 // pred_check_branch
      %135 = sbr.rel (%p132) target = $region24
    $region23: #{bottleneck_forward.3} parent=5 // pred_region
      %s136 = ssub.s32 %s9, 1
      %s137 = sadd.s32 %s18, %s19
      %p138 = scmp.lt.s32.totalorder %s137, 1
      %s139 = scalar_select %p138, %s137, 1
      %s140 = smul.addr %s139, 2
      %s141 = smul.addr %s140, 4
      %s142 = scalar_lea.vmem %s0, %s141
      %p143 = pneg %p49
      %p144 = pneg %p46
      %p145 = pneg %p75
      %p146 = pneg %p72
      %p147 = scmp.lt.s32.totalorder %s18, 1
      %s148 = scalar_select %p147, %s18, 1
      %s149 = smul.addr %s148, 4
      %s150 = scalar_lea.vmem %s1, %s149
      %p151 = pneg %p101
      %p152 = pneg %p98
      %p153 = scmp.lt.s32.totalorder %s18, 1
      %s154 = scalar_select %p153, %s18, 1
      %s155 = smul.addr %s154, 4
      %s156 = scalar_lea.vmem %s2, %s155
      %s157 = sadd.s32 %s18, %s19
      %p158 = scmp.lt.s32.totalorder %s157, 1
      %s159 = scalar_select %p158, %s157, 1
      %s160 = smul.addr %s159, 2
      %s161 = smul.addr %s160, 4
      %s162 = scalar_lea.vmem %s0, %s161
      %s163 = sadd.s32 %s18, %s19
      %p164 = scmp.lt.s32.totalorder %s18, 1
      %s165 = scalar_select %p164, %s18, 1
      %s166 = smul.addr %s165, 4
      %s167 = scalar_lea.vmem %s1, %s166
      %p168 = scmp.lt.s32.totalorder %s18, 1
      %s169 = scalar_select %p168, %s18, 1
      %s170 = smul.addr %s169, 4
      %s171 = scalar_lea.vmem %s2, %s170
      %p172 = scmp.eq.s32.totalorder %s19, 0
      // Predicated region
      $region25: #{bottleneck_forward.3} parent=23 // pred_check
        %p173 = pneg %p172
      $region26: #{bottleneck_forward.3} parent=23 // pred_check_branch
        %175 = sbr.rel (%p173) target = $region28
      $region27: #{bottleneck_forward.3} parent=23 // pred_region
        %vm176 = vcmask 3072
        %177 = vst.msk [vmem:[%s167] sm:$0xf] %vm176, 0.0
        %178 = vst.msk [vmem:[%s171] sm:$0xf] %vm176, 0.0
      $region28: #{bottleneck_forward.3} parent=23 // pred_fallthru
        _
      %v179 = vld [vmem:[%s162] sm:$0xff]
      %v180 = vld [vmem:[%s167] sm:$0xf]
      %182 = vst [vmem:[#allocation1] ss:$2 sm:$0xff] %v179
      %v183 = vld.sshfl [vmem:[#allocation1] sm:$0xff pattern:$0x75316420]
      %v184 = vld.sshfl [vmem:[#allocation1 + $0x8] sm:$0xff pattern:$0x75316420]
      %vm187 = vcmask 1043456
      %v188 = vsel %vm187, %v183, 0.0
      %v189 = vsel %vm187, %v184, 0.0
      %v190 = vadd.f32 %v188, %v189
      %191 = vadd.xlane.f32.xlu0 %v190
      %v192 = vpop.xlane.xlu0 %191
      %v193 = vadd.f32 %v180, %v192
      %vm194 = vcmask 3072
      %195 = vst.msk [vmem:[%s167] sm:$0xf] %vm194, %v193
      %v196 = vld [vmem:[%s171] sm:$0xf]
      %v197 = vmul.f32 %v179, %v179
      %199 = vst [vmem:[#allocation1] ss:$2 sm:$0xff] %v197
      %v200 = vld.sshfl [vmem:[#allocation1] sm:$0xff pattern:$0x75316420]
      %v201 = vld.sshfl [vmem:[#allocation1 + $0x8] sm:$0xff pattern:$0x75316420]
      %v204 = vsel %vm187, %v200, 0.0
      %v205 = vsel %vm187, %v201, 0.0
      %v206 = vadd.f32 %v204, %v205
      %207 = vadd.xlane.f32.xlu0 %v206
      %v208 = vpop.xlane.xlu0 %207
      %v209 = vadd.f32 %v196, %v208
      %210 = vst.msk [vmem:[%s171] sm:$0xf] %vm194, %v209
      %p211 = scmp.lt.s32.totalorder %s18, 1
      %s212 = scalar_select %p211, %s18, 1
      %s213 = smul.addr %s212, 4
      %s214 = scalar_lea.vmem %s1, %s213
      %p215 = scmp.lt.s32.totalorder %s18, 1
      %s216 = scalar_select %p215, %s18, 1
      %s217 = smul.addr %s216, 4
      %s218 = scalar_lea.vmem %s2, %s217
      // Predicated region
      $region29: #{bottleneck_forward.3} parent=23 // pred_check
        %p219 = pneg %p72
      $region30: #{bottleneck_forward.3} parent=23 // pred_check_branch
        %221 = sbr.rel (%p219) target = $region32
      $region31: #{bottleneck_forward.3} parent=23 // pred_region
        _
      $region32: #{bottleneck_forward.3} parent=23 // pred_fallthru
        _
      // Predicated region
      $region33: #{bottleneck_forward.3} parent=23 // pred_check
        %p222 = pneg %p98
      $region34: #{bottleneck_forward.3} parent=23 // pred_check_branch
        %224 = sbr.rel (%p222) target = $region36
      $region35: #{bottleneck_forward.3} parent=23 // pred_region
        _
      $region36: #{bottleneck_forward.3} parent=23 // pred_fallthru
        _
    $region24: #{bottleneck_forward.3} parent=5 // pred_fallthru
      _
    %p225 = scmp.le.s32.totalorder 2, %s9
    // Predicated region
    $region37: #{bottleneck_forward.3} parent=5 // pred_check
      %p226 = pneg %p225
    $region38: #{bottleneck_forward.3} parent=5 // pred_check_branch
      %228 = sbr.rel (%p226) target = $region40
    $region39: #{bottleneck_forward.3} parent=5 // pred_region
      %s229 = ssub.s32 %s9, 2
      // Predicated region
      $region41: #{bottleneck_forward.3} parent=39 // pred_check
        %p230 = pneg %p78
      $region42: #{bottleneck_forward.3} parent=39 // pred_check_branch
        %232 = sbr.rel (%p230) target = $region44
      $region43: #{bottleneck_forward.3} parent=39 // pred_region
        %p233 = scmp.lt.s32.totalorder %s20, 1
        %s234 = scalar_select %p233, %s20, 1
        %s235 = smul.addr %s234, 4
        %s236 = scalar_lea.vmem %s1, %s235
      $region44: #{bottleneck_forward.3} parent=39 // pred_fallthru
        _
      // Predicated region
      $region45: #{bottleneck_forward.3} parent=39 // pred_check
        %p237 = pneg %p104
      $region46: #{bottleneck_forward.3} parent=39 // pred_check_branch
        %239 = sbr.rel (%p237) target = $region48
      $region47: #{bottleneck_forward.3} parent=39 // pred_region
        %p240 = scmp.lt.s32.totalorder %s20, 1
        %s241 = scalar_select %p240, %s20, 1
        %s242 = smul.addr %s241, 4
        %s243 = scalar_lea.vmem %s2, %s242
      $region48: #{bottleneck_forward.3} parent=39 // pred_fallthru
        _
    $region40: #{bottleneck_forward.3} parent=5 // pred_fallthru
      _
  $region6: #{bottleneck_forward.3} parent=0 // loop_footer
    %s13 = sadd.s32 1, %s9
  $region7: #{bottleneck_forward.3} parent=0 // loop_footer_branch
    %8 = sbr.rel target = $region3
  $region8: #{bottleneck_forward.3} parent=0 // loop_exit
    _

// kernel: bottleneck_forward.5
$region0: #{bottleneck_forward.5}
  #allocation0 [shape = 'u32[]', space=smem, size = 0x4, offset = 0x4, fixed_abs, tag = 'smem constant byte address 0x4 - core index']
  #allocation1 [shape = 'u32[72,128]{1,0:T(1,128)}', space=vmem, size = 0x9000, scoped, tag = 'internal scratch']
  %s0 = inlined_call_operand.vmem [shape: f32[2,4,256], index: 0, kind: input, shape index: {}]
  %s1 = inlined_call_operand.vmem [shape: f32[2,16,256], index: 1, kind: input, shape index: {}]
  %s2 = inlined_call_operand.vmem [shape: f32[16,1], index: 2, kind: input, shape index: {}]
  %s3 = inlined_call_operand.vmem [shape: f32[16,1], index: 3, kind: input, shape index: {}]
  %s4 = inlined_call_operand.vmem [shape: f32[36,16], index: 4, kind: input, shape index: {}]
  %s5 = inlined_call_operand.vmem [shape: f32[9,256], index: 5, kind: input, shape index: {}]
  %s6 = inlined_call_operand.vmem [shape: f32[2,8,256], index: 6, kind: output, shape index: {}]
  %s7 = sld [smem:[#allocation0]]
  $region57: #{bottleneck_forward.5} parent=0
    _
  %s9 = ssub.s32 1, %s7
  %s10 = scalar_select 0, %s9, %s7
  loop: start=0, step=1, limit=4
  $region2: #{bottleneck_forward.5} parent=0 // loop_pre_header
    _
  $region3: #{bottleneck_forward.5} parent=0 // loop_header
    %s12 = sphi 0, %s16
    %p13 = scmp.ge.s32.totalorder %s12, 4
    %s22 = sphi 0, %s24
    %s25 = sphi 0, %s22
    %s26 = sphi 0, %s25
    %s42 = sphi 0, %s26
    %s48 = sphi 0, %s50
    %s51 = sphi 0, %s48
    %s52 = sphi 0, %s51
    %s68 = sphi 0, %s52
    %s72 = sphi 0, %s72
    %s74 = sphi 0, %s72
    %s75 = sphi 0, %s74
    %s89 = sphi 0, %s75
    %s93 = sphi 0, %s93
    %s95 = sphi 0, %s93
    %s96 = sphi 0, %s95
    %s110 = sphi 0, %s96
    %s114 = sphi 0, %s114
    %s116 = sphi 0, %s114
    %s117 = sphi 0, %s116
    %s131 = sphi 0, %s117
    %s135 = sphi 0, %s135
    %s137 = sphi 0, %s135
    %s138 = sphi 0, %s137
    %s152 = sphi 0, %s138
    %s158 = sphi 0, %s160
    %s161 = sphi 0, %s158
    %s162 = sphi 0, %s161
    %s178 = sphi 0, %s162
  $region4: #{bottleneck_forward.5} parent=0 // loop_header_branch
    %15 = sbr.rel (%p13) target = $region8
  $region5: #{bottleneck_forward.5} parent=0 // loop_body
    %s17 = ssub.s32 %s12, 1
    %s18 = ssub.s32 %s12, 2
    %s19 = sadd.s32 %s12, 1
    %s20 = ssub.s32 %s12, %s19
    %p21 = scmp.eq.s32.totalorder %s20, 0
    %s23 = sadd.s32 %s22, 1
    %s24 = scalar_select %p21, %s22, %s23
    %p27 = pneg %p21
    %p28 = scmp.eq.s32.totalorder %s12, 1
    %p29 = por %p27, %p28
    %p30 = scmp.ne.s32.totalorder %s22, %s25
    %p31 = scmp.eq.s32.totalorder %s12, 0
    %p32 = por %p30, %p31
    %p33 = scmp.ne.s32.totalorder %s22, %s25
    %p34 = scmp.eq.s32.totalorder %s17, 1
    %p35 = por %p33, %p34
    %p36 = scmp.ne.s32.totalorder %s25, %s26
    %p37 = scmp.eq.s32.totalorder %s17, 0
    %p38 = por %p36, %p37
    %p39 = scmp.ne.s32.totalorder %s25, %s26
    %p40 = scmp.eq.s32.totalorder %s18, 1
    %p41 = por %p39, %p40
    %p43 = scmp.ne.s32.totalorder %s26, %s42
    %p44 = scmp.eq.s32.totalorder %s18, 0
    %p45 = por %p43, %p44
    %s46 = ssub.s32 %s12, %s19
    %p47 = scmp.eq.s32.totalorder %s46, 0
    %s49 = sadd.s32 %s48, 1
    %s50 = scalar_select %p47, %s48, %s49
    %p53 = pneg %p47
    %p54 = scmp.eq.s32.totalorder %s12, 1
    %p55 = por %p53, %p54
    %p56 = scmp.ne.s32.totalorder %s48, %s51
    %p57 = scmp.eq.s32.totalorder %s12, 0
    %p58 = por %p56, %p57
    %p59 = scmp.ne.s32.totalorder %s48, %s51
    %p60 = scmp.eq.s32.totalorder %s17, 1
    %p61 = por %p59, %p60
    %p62 = scmp.ne.s32.totalorder %s51, %s52
    %p63 = scmp.eq.s32.totalorder %s17, 0
    %p64 = por %p62, %p63
    %p65 = scmp.ne.s32.totalorder %s51, %s52
    %p66 = scmp.eq.s32.totalorder %s18, 1
    %p67 = por %p65, %p66
    %p69 = scmp.ne.s32.totalorder %s52, %s68
    %p70 = scmp.eq.s32.totalorder %s18, 0
    %p71 = por %p69, %p70
    %s73 = sadd.s32 %s72, 1
    %p76 = scmp.eq.s32.totalorder %s12, 1
    %p77 = scmp.ne.s32.totalorder %s72, %s74
    %p78 = scmp.eq.s32.totalorder %s12, 0
    %p79 = por %p77, %p78
    %p80 = scmp.ne.s32.totalorder %s72, %s74
    %p81 = scmp.eq.s32.totalorder %s17, 1
    %p82 = por %p80, %p81
    %p83 = scmp.ne.s32.totalorder %s74, %s75
    %p84 = scmp.eq.s32.totalorder %s17, 0
    %p85 = por %p83, %p84
    %p86 = scmp.ne.s32.totalorder %s74, %s75
    %p87 = scmp.eq.s32.totalorder %s18, 1
    %p88 = por %p86, %p87
    %p90 = scmp.ne.s32.totalorder %s75, %s89
    %p91 = scmp.eq.s32.totalorder %s18, 0
    %p92 = por %p90, %p91
    %s94 = sadd.s32 %s93, 1
    %p97 = scmp.eq.s32.totalorder %s12, 1
    %p98 = scmp.ne.s32.totalorder %s93, %s95
    %p99 = scmp.eq.s32.totalorder %s12, 0
    %p100 = por %p98, %p99
    %p101 = scmp.ne.s32.totalorder %s93, %s95
    %p102 = scmp.eq.s32.totalorder %s17, 1
    %p103 = por %p101, %p102
    %p104 = scmp.ne.s32.totalorder %s95, %s96
    %p105 = scmp.eq.s32.totalorder %s17, 0
    %p106 = por %p104, %p105
    %p107 = scmp.ne.s32.totalorder %s95, %s96
    %p108 = scmp.eq.s32.totalorder %s18, 1
    %p109 = por %p107, %p108
    %p111 = scmp.ne.s32.totalorder %s96, %s110
    %p112 = scmp.eq.s32.totalorder %s18, 0
    %p113 = por %p111, %p112
    %s115 = sadd.s32 %s114, 1
    %p118 = scmp.eq.s32.totalorder %s12, 1
    %p119 = scmp.ne.s32.totalorder %s114, %s116
    %p120 = scmp.eq.s32.totalorder %s12, 0
    %p121 = por %p119, %p120
    %p122 = scmp.ne.s32.totalorder %s114, %s116
    %p123 = scmp.eq.s32.totalorder %s17, 1
    %p124 = por %p122, %p123
    %p125 = scmp.ne.s32.totalorder %s116, %s117
    %p126 = scmp.eq.s32.totalorder %s17, 0
    %p127 = por %p125, %p126
    %p128 = scmp.ne.s32.totalorder %s116, %s117
    %p129 = scmp.eq.s32.totalorder %s18, 1
    %p130 = por %p128, %p129
    %p132 = scmp.ne.s32.totalorder %s117, %s131
    %p133 = scmp.eq.s32.totalorder %s18, 0
    %p134 = por %p132, %p133
    %s136 = sadd.s32 %s135, 1
    %p139 = scmp.eq.s32.totalorder %s12, 1
    %p140 = scmp.ne.s32.totalorder %s135, %s137
    %p141 = scmp.eq.s32.totalorder %s12, 0
    %p142 = por %p140, %p141
    %p143 = scmp.ne.s32.totalorder %s135, %s137
    %p144 = scmp.eq.s32.totalorder %s17, 1
    %p145 = por %p143, %p144
    %p146 = scmp.ne.s32.totalorder %s137, %s138
    %p147 = scmp.eq.s32.totalorder %s17, 0
    %p148 = por %p146, %p147
    %p149 = scmp.ne.s32.totalorder %s137, %s138
    %p150 = scmp.eq.s32.totalorder %s18, 1
    %p151 = por %p149, %p150
    %p153 = scmp.ne.s32.totalorder %s138, %s152
    %p154 = scmp.eq.s32.totalorder %s18, 0
    %p155 = por %p153, %p154
    %s156 = ssub.s32 %s12, %s19
    %p157 = scmp.eq.s32.totalorder %s156, 0
    %s159 = sadd.s32 %s158, 1
    %s160 = scalar_select %p157, %s158, %s159
    %p163 = pneg %p157
    %p164 = scmp.eq.s32.totalorder %s12, 1
    %p165 = por %p163, %p164
    %p166 = scmp.ne.s32.totalorder %s158, %s161
    %p167 = scmp.eq.s32.totalorder %s12, 0
    %p168 = por %p166, %p167
    %p169 = scmp.ne.s32.totalorder %s158, %s161
    %p170 = scmp.eq.s32.totalorder %s17, 1
    %p171 = por %p169, %p170
    %p172 = scmp.ne.s32.totalorder %s161, %s162
    %p173 = scmp.eq.s32.totalorder %s17, 0
    %p174 = por %p172, %p173
    %p175 = scmp.ne.s32.totalorder %s161, %s162
    %p176 = scmp.eq.s32.totalorder %s18, 1
    %p177 = por %p175, %p176
    %p179 = scmp.ne.s32.totalorder %s162, %s178
    %p180 = scmp.eq.s32.totalorder %s18, 0
    %p181 = por %p179, %p180
    %p182 = scmp.le.s32.totalorder 1, %s12
    %p183 = scmp.lt.s32.totalorder %s12, 3
    %p184 = pnand %p182, %p183
    %p185 = pneg %p184
    // Predicated region
    $region9: #{bottleneck_forward.5} parent=5 // pred_check
      _
    $region10: #{bottleneck_forward.5} parent=5 // pred_check_branch
      %187 = sbr.rel (%p184) target = $region12
    $region11: #{bottleneck_forward.5} parent=5 // pred_region
      %s188 = ssub.s32 %s12, 1
      // Predicated region
      $region13: #{bottleneck_forward.5} parent=11 // pred_check
        %p189 = pneg %p85
      $region14: #{bottleneck_forward.5} parent=11 // pred_check_branch
        %191 = sbr.rel (%p189) target = $region16
      $region15: #{bottleneck_forward.5} parent=11 // pred_region
        _
      $region16: #{bottleneck_forward.5} parent=11 // pred_fallthru
        _
      // Predicated region
      $region17: #{bottleneck_forward.5} parent=11 // pred_check
        %p192 = pneg %p106
      $region18: #{bottleneck_forward.5} parent=11 // pred_check_branch
        %194 = sbr.rel (%p192) target = $region20
      $region19: #{bottleneck_forward.5} parent=11 // pred_region
        _
      $region20: #{bottleneck_forward.5} parent=11 // pred_fallthru
        _
      // Predicated region
      $region21: #{bottleneck_forward.5} parent=11 // pred_check
        %p195 = pneg %p127
      $region22: #{bottleneck_forward.5} parent=11 // pred_check_branch
        %197 = sbr.rel (%p195) target = $region24
      $region23: #{bottleneck_forward.5} parent=11 // pred_region
        _
      $region24: #{bottleneck_forward.5} parent=11 // pred_fallthru
        _
      // Predicated region
      $region25: #{bottleneck_forward.5} parent=11 // pred_check
        %p198 = pneg %p148
      $region26: #{bottleneck_forward.5} parent=11 // pred_check_branch
        %200 = sbr.rel (%p198) target = $region28
      $region27: #{bottleneck_forward.5} parent=11 // pred_region
        _
      $region28: #{bottleneck_forward.5} parent=11 // pred_fallthru
        _
    $region12: #{bottleneck_forward.5} parent=5 // pred_fallthru
      _
    %p201 = scmp.lt.s32.totalorder %s12, 2
    // Predicated region
    $region29: #{bottleneck_forward.5} parent=5 // pred_check
      %p202 = pneg %p201
    $region30: #{bottleneck_forward.5} parent=5 // pred_check_branch
      %204 = sbr.rel (%p202) target = $region32
    $region31: #{bottleneck_forward.5} parent=5 // pred_region
      // Predicated region
      $region33: #{bottleneck_forward.5} parent=31 // pred_check
        %p205 = pneg %p32
      $region34: #{bottleneck_forward.5} parent=31 // pred_check_branch
        %207 = sbr.rel (%p205) target = $region36
      $region35: #{bottleneck_forward.5} parent=31 // pred_region
        %p208 = scmp.lt.s32.totalorder %s12, 1
        %s209 = scalar_select %p208, %s12, 1
        %s210 = smul.addr %s209, 2
        %s211 = smul.addr %s210, 4
        %s212 = scalar_lea.vmem %s0, %s211
      $region36: #{bottleneck_forward.5} parent=31 // pred_fallthru
        _
      // Predicated region
      $region37: #{bottleneck_forward.5} parent=31 // pred_check
        %p213 = pneg %p58
      $region38: #{bottleneck_forward.5} parent=31 // pred_check_branch
        %215 = sbr.rel (%p213) target = $region40
      $region39: #{bottleneck_forward.5} parent=31 // pred_region
        %p216 = scmp.lt.s32.totalorder %s12, 1
        %s217 = scalar_select %p216, %s12, 1
        %s218 = smul.addr %s217, 4
        %s219 = smul.addr %s218, 8
        %s220 = scalar_lea.vmem %s1, %s219
      $region40: #{bottleneck_forward.5} parent=31 // pred_fallthru
        _
    $region32: #{bottleneck_forward.5} parent=5 // pred_fallthru
      _
    %p221 = scmp.le.s32.totalorder 1, %s12
    %p222 = scmp.lt.s32.totalorder %s12, 3
    %p223 = pnand %p221, %p222
    %p224 = pneg %p223
    // Predicated region
    $region41: #{bottleneck_forward.5} parent=5 // pred_check
      _
    $region42: #{bottleneck_forward.5} parent=5 // pred_check_branch
      %226 = sbr.rel (%p223) target = $region44
    $region43: #{bottleneck_forward.5} parent=5 // pred_region
      %s227 = ssub.s32 %s12, 1
      %p228 = scmp.lt.s32.totalorder %s17, 1
      %s229 = scalar_select %p228, %s17, 1
      %s230 = smul.addr %s229, 2
      %s231 = smul.addr %s230, 4
      %s232 = scalar_lea.vmem %s0, %s231
      %p233 = pneg %p38
      %p234 = pneg %p35
      %p235 = scmp.lt.s32.totalorder %s17, 1
      %s236 = scalar_select %p235, %s17, 1
      %s237 = smul.addr %s236, 4
      %s238 = smul.addr %s237, 8
      %s239 = scalar_lea.vmem %s1, %s238
      %p240 = pneg %p64
      %p241 = pneg %p61
      %p242 = pneg %p85
      %p243 = pneg %p82
      %p244 = pneg %p106
      %p245 = pneg %p103
      %p246 = pneg %p127
      %p247 = pneg %p124
      %p248 = pneg %p148
      %p249 = pneg %p145
      %p250 = pneg %p174
      %p251 = pneg %p171
      %p252 = scmp.lt.s32.totalorder %s17, 1
      %s253 = scalar_select %p252, %s17, 1
      %s254 = smul.addr %s253, 2
      %s255 = smul.addr %s254, 8
      %s256 = scalar_lea.vmem %s6, %s255
      %p257 = scmp.lt.s32.totalorder %s17, 1
      %s258 = scalar_select %p257, %s17, 1
      %s259 = smul.addr %s258, 2
      %s260 = smul.addr %s259, 4
      %s261 = scalar_lea.vmem %s0, %s260
      %p262 = scmp.lt.s32.totalorder %s17, 1
      %s263 = scalar_select %p262, %s17, 1
      %s264 = smul.addr %s263, 4
      %s265 = smul.addr %s264, 8
      %s266 = scalar_lea.vmem %s1, %s265
      %p267 = scmp.lt.s32.totalorder %s17, 1
      %s268 = scalar_select %p267, %s17, 1
      %s269 = smul.addr %s268, 2
      %s270 = smul.addr %s269, 8
      %s271 = scalar_lea.vmem %s6, %s270
      %v272 = vld [vmem:[%s266] sm:$0xff]
      %v273 = vld [vmem:[%s266 + $0x8] sm:$0xff]
      %v274 = vld [vmem:[%s266 + $0x10] sm:$0xff]
      %v275 = vld [vmem:[%s266 + $0x18] sm:$0xff]
      %v276 = vld [vmem:[%s2] sm:$0xff]
      %v277 = vld [vmem:[%s2 + $0x8] sm:$0xff]
      %279 = vset.pattern.permute.xlu0 0
      %280 = vperm.xlu0 %279, %v276
      %v281 = vpop.permute.xlu0 %280
      %284 = vset.pattern.permute.xlu0 0
      %285 = vperm.xlu0 %284, %v277
      %v286 = vpop.permute.xlu0 %285
      %v288 = vmul.f32 %v272, %v281
      %v289 = vmul.f32 %v273, %v281
      %v290 = vmul.f32 %v274, %v286
      %v291 = vmul.f32 %v275, %v286
      %v292 = vld [vmem:[%s3] sm:$0xff]
      %v293 = vld [vmem:[%s3 + $0x8] sm:$0xff]
      %295 = vset.pattern.permute.xlu0 0
      %296 = vperm.xlu0 %295, %v292
      %v297 = vpop.permute.xlu0 %296
      %300 = vset.pattern.permute.xlu0 0
      %301 = vperm.xlu0 %300, %v293
      %v302 = vpop.permute.xlu0 %301
      %v304 = vadd.f32 %v288, %v297
      %v305 = vadd.f32 %v289, %v297
      %v306 = vadd.f32 %v290, %v302
      %v307 = vadd.f32 %v291, %v302
      %v308 = vmax.f32 %v304, 0.0
      %v309 = vmax.f32 %v305, 0.0
      %v310 = vmax.f32 %v306, 0.0
      %v311 = vmax.f32 %v307, 0.0
      %v312 = vld [vmem:[%s4] sm:$0xff]
      %v313 = vld [vmem:[%s4 + $0x8] sm:$0xff]
      %v314 = vld [vmem:[%s4 + $0x10] sm:$0xff]
      %v315 = vld [vmem:[%s4 + $0x18] sm:$0xff]
      %v316 = vld [vmem:[%s4 + $0x20] sm:$0xf]
      %vm317 = vcmask 130048
      %v319 = vsel %vm317, %v312, 0
      %v322 = vsel %vm317, %v313, 0
      %v325 = vsel %vm317, %v314, 0
      %v328 = vsel %vm317, %v315, 0
      %v331 = vsel %vm317, %v316, 0
      %333 = vmatpush.msra.mxu0 0.0
      %334 = vmatpush.msra.mxu0 0.0
      %335 = vmatpush.msra.mxu0 0.0
      %336 = vmatpush.msra.mxu0 0.0
      %337 = vmatpush.msra.mxu0 0.0
      %338 = vmatpush.msra.mxu0 0.0
      %339 = vmatpush.msra.mxu0 0.0
      %340 = vmatpush.msra.mxu0 0.0
      %341 = vmatpush.msra.mxu0 0.0
      %342 = vmatpush.msra.mxu0 0.0
      %343 = vmatpush.msra.mxu0 0.0
      %344 = vmatpush.msra.mxu0 0.0
      %345 = vmatpush.msra.mxu0 0.0
      %346 = vmatpush.msra.mxu0 0.0
      %347 = vmatpush.msra.mxu0 %v310
      %348 = vmatpush.msra.mxu0 %v308
      %349 = vmatmul.f32.gmra.mxu0 %v319
      %v350 = vpop.f32.mrf.mxu0
      %v351 = vadd.f32 0.0, %v350
      %352 = vmatmul.f32.gmra.mxu0 %v322
      %v353 = vpop.f32.mrf.mxu0
      %v354 = vadd.f32 0.0, %v353
      %355 = vmatmul.f32.gmra.mxu0 %v325
      %v356 = vpop.f32.mrf.mxu0
      %v357 = vadd.f32 0.0, %v356
      %358 = vmatmul.f32.gmra.mxu0 %v328
      %v359 = vpop.f32.mrf.mxu0
      %v360 = vadd.f32 0.0, %v359
      %361 = vmatmul.f32.gmra.mxu0 %v331
      %v362 = vpop.f32.mrf.mxu0
      %v363 = vadd.f32 0.0, %v362
      %364 = vdwg.mxu0
      %365 = vmatpush.msra.mxu0 0.0
      %366 = vmatpush.msra.mxu0 0.0
      %367 = vmatpush.msra.mxu0 0.0
      %368 = vmatpush.msra.mxu0 0.0
      %369 = vmatpush.msra.mxu0 0.0
      %370 = vmatpush.msra.mxu0 0.0
      %371 = vmatpush.msra.mxu0 0.0
      %372 = vmatpush.msra.mxu0 0.0
      %373 = vmatpush.msra.mxu0 0.0
      %374 = vmatpush.msra.mxu0 0.0
      %375 = vmatpush.msra.mxu0 0.0
      %376 = vmatpush.msra.mxu0 0.0
      %377 = vmatpush.msra.mxu0 0.0
      %378 = vmatpush.msra.mxu0 0.0
      %379 = vmatpush.msra.mxu0 %v311
      %380 = vmatpush.msra.mxu0 %v309
      %381 = vmatmul.f32.gmra.mxu0 %v319
      %v382 = vpop.f32.mrf.mxu0
      %v383 = vadd.f32 0.0, %v382
      %384 = vmatmul.f32.gmra.mxu0 %v322
      %v385 = vpop.f32.mrf.mxu0
      %v386 = vadd.f32 0.0, %v385
      %387 = vmatmul.f32.gmra.mxu0 %v325
      %v388 = vpop.f32.mrf.mxu0
      %v389 = vadd.f32 0.0, %v388
      %390 = vmatmul.f32.gmra.mxu0 %v328
      %v391 = vpop.f32.mrf.mxu0
      %v392 = vadd.f32 0.0, %v391
      %393 = vmatmul.f32.gmra.mxu0 %v331
      %v394 = vpop.f32.mrf.mxu0
      %v395 = vadd.f32 0.0, %v394
      %396 = vdwg.mxu0
      %v397 = vld [vmem:[%s5] sm:$0xff]
      %v398 = vld [vmem:[%s5 + $0x8] sm:$0xff]
      %v399 = vld [vmem:[%s5 + $0x10] sm:$0x1]
      %v400 = vld [vmem:[%s5 + $0x18] sm:$0x1]
      %402 = vrot.lane.b32.xlu0 %v383, 17
      %v403 = vpop.permute.xlu0 %402
      %406 = vrot.lane.b32.xlu0 %v351, 17
      %v407 = vpop.permute.xlu0 %406
      %vm408 = vcmask 138240
      %v409 = vsel %vm408, %v407, %v403
      %v412 = vsel %vm408, %v403, %v407
      %v413 = vperm.slane %v397, 0
      %v414 = vperm.slane %v398, 0
      %v415 = vmul.f32 %v412, %v413
      %v416 = vmul.f32 %v409, %v414
      %v417 = vadd.f32 %v415, 0.0
      %v418 = vadd.f32 %v416, 0.0
      %419 = vrot.lane.b32.xlu0 %v383, 16
      %v420 = vpop.permute.xlu0 %419
      %422 = vrot.lane.b32.xlu0 %v351, 16
      %v423 = vpop.permute.xlu0 %422
      %v424 = vsel %vm317, %v423, %v420
      %v427 = vsel %vm317, %v420, %v423
      %v428 = vperm.slane %v397, 1
      %v429 = vperm.slane %v398, 1
      %v430 = vmul.f32 %v427, %v428
      %v431 = vmul.f32 %v424, %v429
      %v434 = vrot.slane %v430, 4
      %v435 = vrot.slane %v431, 4
      %v438 = vadd.f32 %v417, %v434
      %v439 = vadd.f32 %v418, %v435
      %441 = vrot.lane.b32.xlu0 %v386, 15
      %v442 = vpop.permute.xlu0 %441
      %445 = vrot.lane.b32.xlu0 %v354, 15
      %v446 = vpop.permute.xlu0 %445
      %vm447 = vcmask 121856
      %v448 = vsel %vm447, %v446, %v442
      %v451 = vsel %vm447, %v442, %v446
      %v452 = vperm.slane %v397, 2
      %v453 = vperm.slane %v398, 2
      %v454 = vmul.f32 %v451, %v452
      %v455 = vmul.f32 %v448, %v453
      %v456 = vadd.f32 %v438, %v454
      %v457 = vadd.f32 %v439, %v455
      %458 = vrot.lane.b32.xlu0 %v386, 1
      %v459 = vpop.permute.xlu0 %458
      %461 = vrot.lane.b32.xlu0 %v354, 1
      %v462 = vpop.permute.xlu0 %461
      %vm463 = vcmask 7168
      %v464 = vsel %vm463, %v462, %v459
      %v467 = vsel %vm463, %v459, %v462
      %v468 = vperm.slane %v397, 3
      %v469 = vperm.slane %v398, 3
      %v470 = vmul.f32 %v467, %v468
      %v471 = vmul.f32 %v464, %v469
      %v474 = vrot.slane %v470, 4
      %v475 = vrot.slane %v471, 4
      %v478 = vadd.f32 %v456, %v474
      %v479 = vadd.f32 %v457, %v475
      %v480 = vperm.slane %v397, 4
      %v481 = vperm.slane %v398, 4
      %v482 = vmul.f32 %v357, %v480
      %v483 = vmul.f32 %v389, %v481
      %v484 = vadd.f32 %v478, %v482
      %v485 = vadd.f32 %v479, %v483
      %488 = vrot.lane.b32.xlu0 %v357, 127
      %v489 = vpop.permute.xlu0 %488
      %490 = vrot.lane.b32.xlu0 %v389, 127
      %v491 = vpop.permute.xlu0 %490
      %vm492 = vcmask 1039360
      %v493 = vsel %vm492, %v489, %v491
      %v497 = vsel %vm492, %v491, %v489
      %v498 = vperm.slane %v397, 5
      %v499 = vperm.slane %v398, 5
      %v500 = vmul.f32 %v493, %v498
      %v501 = vmul.f32 %v497, %v499
      %v504 = vrot.slane %v500, 4
      %v505 = vrot.slane %v501, 4
      %v508 = vadd.f32 %v484, %v504
      %v509 = vadd.f32 %v485, %v505
      %512 = vrot.lane.b32.xlu0 %v360, 113
      %v513 = vpop.permute.xlu0 %512
      %514 = vrot.lane.b32.xlu0 %v392, 113
      %v515 = vpop.permute.xlu0 %514
      %vm516 = vcmask 924672
      %v517 = vsel %vm516, %v513, %v515
      %v521 = vsel %vm516, %v515, %v513
      %v522 = vperm.slane %v397, 6
      %v523 = vperm.slane %v398, 6
      %v524 = vmul.f32 %v517, %v522
      %v525 = vmul.f32 %v521, %v523
      %v526 = vadd.f32 %v508, %v524
      %v527 = vadd.f32 %v509, %v525
      %528 = vrot.lane.b32.xlu0 %v360, 112
      %v529 = vpop.permute.xlu0 %528
      %530 = vrot.lane.b32.xlu0 %v392, 112
      %v531 = vpop.permute.xlu0 %530
      %vm532 = vcmask 916480
      %v533 = vsel %vm532, %v529, %v531
      %v537 = vsel %vm532, %v531, %v529
      %v538 = vperm.slane %v397, 7
      %v539 = vperm.slane %v398, 7
      %v540 = vmul.f32 %v533, %v538
      %v541 = vmul.f32 %v537, %v539
      %v544 = vrot.slane %v540, 4
      %v545 = vrot.slane %v541, 4
      %v548 = vadd.f32 %v526, %v544
      %v549 = vadd.f32 %v527, %v545
      %552 = vrot.lane.b32.xlu0 %v363, 111
      %v553 = vpop.permute.xlu0 %552
      %554 = vrot.lane.b32.xlu0 %v395, 111
      %v555 = vpop.permute.xlu0 %554
      %vm556 = vcmask 908288
      %v557 = vsel %vm556, %v553, %v555
      %v561 = vsel %vm556, %v555, %v553
      %v562 = vperm.slane %v399, 0
      %v563 = vperm.slane %v400, 0
      %v564 = vmul.f32 %v557, %v562
      %v565 = vmul.f32 %v561, %v563
      %v566 = vadd.f32 %v548, %v564
      %v567 = vadd.f32 %v549, %v565
      %v568 = vld [vmem:[%s261] sm:$0xff]
      %570 = vst [vmem:[#allocation1] ss:$2 sm:$0xff] %v568
      %v571 = vld.sshfl [vmem:[#allocation1] sm:$0xff pattern:$0x75316420]
      %v572 = vld.sshfl [vmem:[#allocation1 + $0x8] sm:$0xff pattern:$0x75316420]
      %575 = vst [vmem:[%s271] sm:$0xf] %v571
      %576 = vst [vmem:[%s271 + $0x8] sm:$0xf] %v572
      %v579 = vrot.slane %v566, 4
      %v580 = vrot.slane %v567, 4
      %583 = vst [vmem:[%s271] sm:$0xf0] %v579
      %584 = vst [vmem:[%s271 + $0x8] sm:$0xf0] %v580
      %p585 = scmp.lt.s32.totalorder %s17, 1
      %s586 = scalar_select %p585, %s17, 1
      %s587 = smul.addr %s586, 2
      %s588 = smul.addr %s587, 8
      %s589 = scalar_lea.vmem %s6, %s588
      // Predicated region
      $region45: #{bottleneck_forward.5} parent=43 // pred_check
        %p590 = pneg %p171
      $region46: #{bottleneck_forward.5} parent=43 // pred_check_branch
        %592 = sbr.rel (%p590) target = $region48
      $region47: #{bottleneck_forward.5} parent=43 // pred_region
        _
      $region48: #{bottleneck_forward.5} parent=43 // pred_fallthru
        _
    $region44: #{bottleneck_forward.5} parent=5 // pred_fallthru
      _
    %p593 = scmp.le.s32.totalorder 2, %s12
    // Predicated region
    $region49: #{bottleneck_forward.5} parent=5 // pred_check
      %p594 = pneg %p593
    $region50: #{bottleneck_forward.5} parent=5 // pred_check_branch
      %596 = sbr.rel (%p594) target = $region52
    $region51: #{bottleneck_forward.5} parent=5 // pred_region
      %s597 = ssub.s32 %s12, 2
      // Predicated region
      $region53: #{bottleneck_forward.5} parent=51 // pred_check
        %p598 = pneg %p177
      $region54: #{bottleneck_forward.5} parent=51 // pred_check_branch
        %600 = sbr.rel (%p598) target = $region56
      $region55: #{bottleneck_forward.5} parent=51 // pred_region
        %p601 = scmp.lt.s32.totalorder %s18, 1
        %s602 = scalar_select %p601, %s18, 1
        %s603 = smul.addr %s602, 2
        %s604 = smul.addr %s603, 8
        %s605 = scalar_lea.vmem %s6, %s604
      $region56: #{bottleneck_forward.5} parent=51 // pred_fallthru
        _
    $region52: #{bottleneck_forward.5} parent=5 // pred_fallthru
      _
  $region6: #{bottleneck_forward.5} parent=0 // loop_footer
    %s16 = sadd.s32 1, %s12
  $region7: #{bottleneck_forward.5} parent=0 // loop_footer_branch
    %11 = sbr.rel target = $region3
  $region8: #{bottleneck_forward.5} parent=0 // loop_exit
    _

</llo_original>
